<compile_context>
chip_gen: v7x
topology: tpu7x:2x2x1
jax: 0.10.0
libtpu: 0.0.40
codegen_flags: <defaults>
</compile_context>

<pallas_src>
import math
from functools import partial

import jax
import jax.numpy as jnp
from jax import lax
from jax.experimental import pallas as pl
from jax.experimental.pallas import tpu as pltpu


_LN_EPS = 1e-5
_INV_SQRT2 = 1.0 / math.sqrt(2.0)
_MIN_GRID_STEPS = 8      # >=2 steps per TensorCore (v7x megacore) + DMA overlap
_MAX_ROW_TILE = 1024     # 512-1024 row tiles already reach ~85% of HBM roofline


def _round_up(x, m):
    return -(-x // m) * m


def _gelu_exact(x):
    # PyTorch nn.GELU() default: 0.5 * x * (1 + erf(x / sqrt(2)))
    return 0.5 * x * (1.0 + lax.erf(x * _INV_SQRT2))


def _vmem_capacity_bytes():
    try:
        return int(pltpu.get_tpu_info().vmem_capacity_bytes)
    except Exception:
        return 64 * 1024 * 1024  # conservative (v7x-sized) fallback


# ----------------------------------------------------------------------------
# Pallas kernels
# ----------------------------------------------------------------------------
def _fused_mm_ln_gelu_kernel(x_ref, w_ref, b_ref, g_ref, beta_ref, avg_ref,
                             o_ref):
    """o = GELU(LayerNorm(x @ w + b)), LayerNorm over lane groups.

    x:        (TM, GKp)  G patches packed side by side at stride K (zero tail)
    w:        (GKp, L)   block-diagonal weight, blocks at (g*K, g*C_out)
    b/g/beta: (1, L)     per-lane bias / LN scale / LN shift (f32)
    avg:      (L, L)     block-diag group-averaging matrix (compute dtype)
    """
    y = jnp.dot(x_ref[...], w_ref[...], preferred_element_type=jnp.float32)
    y = y + b_ref[...]
    # Grouped LayerNorm stats via two small MXU matmuls; operands in the
    # compute dtype so they do not run as multi-pass f32 on v5e/v6e.
    mean = jnp.dot(y.astype(avg_ref.dtype), avg_ref[...],
                   preferred_element_type=jnp.float32)
    cen = y - mean
    var = jnp.dot((cen * cen).astype(avg_ref.dtype), avg_ref[...],
                  preferred_element_type=jnp.float32)
    yn = cen * lax.rsqrt(var + _LN_EPS) * g_ref[...] + beta_ref[...]
    o_ref[...] = _gelu_exact(yn).astype(o_ref.dtype)


def _mm_bias_kernel(x_ref, w_ref, b_ref, o_ref):
    y = jnp.dot(x_ref[...], w_ref[...], preferred_element_type=jnp.float32)
    o_ref[...] = (y + b_ref[...]).astype(o_ref.dtype)


def _const_spec(shape):
    # Resident across the row grid (weights / bias / LN params / avg matrix).
    return pl.BlockSpec(shape, lambda i: (0, 0))


def _stage_call(kernel, xp, consts, out_dtype, *, bm, vmem_limit):
    Mp, GKp = xp.shape
    L = consts[0].shape[1]
    return pl.pallas_call(
        kernel,
        out_shape=jax.ShapeDtypeStruct((Mp, L), out_dtype),
        grid=(Mp // bm,),
        in_specs=[pl.BlockSpec((bm, GKp), lambda i: (i, 0))]
                 + [_const_spec(c.shape) for c in consts],
        out_specs=pl.BlockSpec((bm, L), lambda i: (i, 0)),
        compiler_params=pltpu.CompilerParams(
            dimension_semantics=("parallel",),
            vmem_limit_bytes=vmem_limit),
    )(xp, *consts)


# ----------------------------------------------------------------------------
# Plain-JAX glue: channels-last im2col (no NCHW round trips between stages)
# ----------------------------------------------------------------------------
def _im2col_nhwc(x, kh, kw, stride, pad):
    """x:(B,H,W,C) -> rows (B*Hout*Wout, kh*kw*C); feature idx = (i*kw+j)*C + c."""
    if pad:
        x = jnp.pad(x, ((0, 0), (pad, pad), (pad, pad), (0, 0)))
    B, H, W, C = x.shape
    Hout = (H - kh) // stride + 1
    Wout = (W - kw) // stride + 1
    cols = []
    for i in range(kh):
        for j in range(kw):
            cols.append(x[:, i:i + stride * Hout:stride,
                             j:j + stride * Wout:stride, :])
    patches = jnp.stack(cols, axis=3)            # (B, Hout, Wout, kh*kw, C)
    return patches.reshape(B * Hout * Wout, kh * kw * C), Hout, Wout


# ----------------------------------------------------------------------------
# Patchify module (forward only)
# ----------------------------------------------------------------------------
class Patchify:
    def __init__(self, img_size=16, patch_size=8, in_chan=4, embed_dim=32,
                 compute_dtype=jnp.bfloat16, key=None):
        if key is None:
            key = jax.random.PRNGKey(0)
        self.img_size = img_size
        self.patch_size = patch_size
        self.n_patches = (img_size // patch_size) ** 2
        self.compute_dtype = compute_dtype

        d4, d2 = embed_dim // 4, embed_dim // 2
        k3 = patch_size // 4

        ks = jax.random.split(key, 6)

        def conv_w(k, cout, cin, kh, kw):
            # deterministic synthetic init (OIHW, like PyTorch)
            return 0.05 * jax.random.normal(k, (cout, cin, kh, kw), jnp.float32)

        # raw params (also used by the pure-JAX reference)
        self.w1 = conv_w(ks[0], d4, in_chan, 7, 7)
        self.b1 = 0.02 * jax.random.normal(ks[1], (d4,), jnp.float32)
        self.g1 = jnp.ones((d4,), jnp.float32)
        self.beta1 = jnp.zeros((d4,), jnp.float32)
        self.w2 = conv_w(ks[2], d2, d4, 3, 3)
        self.b2 = 0.02 * jax.random.normal(ks[3], (d2,), jnp.float32)
        self.g2 = jnp.ones((d2,), jnp.float32)
        self.beta2 = jnp.zeros((d2,), jnp.float32)
        self.w3 = conv_w(ks[4], embed_dim, d2, k3, k3)
        self.b3 = 0.02 * jax.random.normal(ks[5], (embed_dim,), jnp.float32)

        self.cfg = [(7, 2, 3), (3, 2, 1), (k3, k3, 0)]

        self._vmem_cap = _vmem_capacity_bytes()

        self.stages = [
            self._make_stage(self.w1, self.b1, self.g1, self.beta1, fused=True),
            self._make_stage(self.w2, self.b2, self.g2, self.beta2, fused=True),
            self._make_stage(self.w3, self.b3, None, None, fused=False),
        ]

    # ------------------------------------------------------------------
    def _make_stage(self, w_oihw, b, gamma, beta, *, fused):
        cout, cin, kh, kw = w_oihw.shape
        K = kh * kw * cin
        # Lane packing: G patch rows per kernel row -> (up to) 128 lane-dense
        # output stores and 128-wide grouped-LN stat matmuls.  For cout >= 128
        # (production embed_dim) G == 1 and lanes are already dense.
        G = max(1, 128 // cout)
        L = G * cout
        GK = G * K
        GKp = _round_up(GK, 128)     # pad only the TOTAL packed row, not per patch

        # HWIO-flattened weight matching the NHWC im2col feature order, then
        # block-diagonal with blocks offset by (K, cout); zero tail rows make
        # the packed-row padding contribute nothing.
        w = w_oihw.transpose(2, 3, 1, 0).reshape(K, cout)
        w_bd = jnp.kron(jnp.eye(G, dtype=jnp.float32), w)
        w_bd = jnp.pad(w_bd, ((0, GKp - GK), (0, 0)))

        in_item = jnp.dtype(self.compute_dtype).itemsize
        out_dtype = self.compute_dtype if fused else jnp.float32
        out_item = jnp.dtype(out_dtype).itemsize

        st = dict(
            n_out=cout, K=K, G=G, GK=GK, GKp=GKp, L=L, fused=fused,
            out_dtype=out_dtype,
            w=w_bd.astype(self.compute_dtype),
            b=jnp.tile(b, G)[None, :].astype(jnp.float32),
        )
        n_vec, avg_bytes = 1, 0
        if fused:
            st['g'] = jnp.tile(gamma, G)[None, :].astype(jnp.float32)
            st['beta'] = jnp.tile(beta, G)[None, :].astype(jnp.float32)
            st['avg'] = jnp.kron(
                jnp.eye(G, dtype=jnp.float32),
                jnp.full((cout, cout), 1.0 / cout, jnp.float32)
            ).astype(self.compute_dtype)
            n_vec, avg_bytes = 3, L * L * in_item

        # VMEM budget: row tiles are double-buffered (input + output) and the
        # resident constants are double-buffered by default; leave ~40% of
        # physical VMEM for Mosaic scratch and XLA glue.  v5e/v6e (128 MiB)
        # therefore get larger tiles than v7x (64 MiB).
        const_bytes = 2 * (GKp * L * in_item + n_vec * L * 4 + avg_bytes)
        per_row = 2 * (GKp * in_item + L * out_item)
        budget = int(self._vmem_cap * 0.6)
        tm = (budget - const_bytes) // max(per_row, 1)
        row_align = 8 * max(1, 4 // in_item)   # 8 rows for f32, 16 for bf16
        tm = max(row_align, min(_MAX_ROW_TILE, (tm // row_align) * row_align))
        st['tm'] = int(tm)
        st['row_align'] = int(row_align)
        st['const_bytes'] = int(const_bytes)
        st['per_row'] = int(per_row)
        return st

    # ------------------------------------------------------------------
    def _run_stage(self, cols, st):
        M, K = cols.shape
        G, GK, GKp, L = st['G'], st['GK'], st['GKp'], st['L']
        Mg = _round_up(M, G)                       # pad rows to a G-multiple
        if Mg != M:
            cols = jnp.pad(cols, ((0, Mg - M), (0, 0)))
        xp = cols.reshape(Mg // G, GK)             # pack G patches at K-stride
        if GKp != GK:
            xp = jnp.pad(xp, ((0, 0), (0, GKp - GK)))   # pad packed row only
        Mp = xp.shape[0]

        # Row tile: aim for >= _MIN_GRID_STEPS grid steps (both v7x TensorCores
        # busy + DMA/compute overlap), capped by the VMEM-derived tile size.
        ra = st['row_align']
        bm_target = _round_up(-(-Mp // _MIN_GRID_STEPS), ra)
        bm = int(max(ra, min(st['tm'], bm_target)))
        Mp_pad = _round_up(Mp, bm)
        if Mp_pad != Mp:
            xp = jnp.pad(xp, ((0, Mp_pad - Mp), (0, 0)))
        xp = xp.astype(self.compute_dtype)          # no-op: cast happened upstream

        need = st['const_bytes'] + st['per_row'] * bm
        vmem_limit = int(min(self._vmem_cap * 7 // 8,
                             max(32 * 2 ** 20, need + 24 * 2 ** 20)))

        if st['fused']:
            consts = (st['w'], st['b'], st['g'], st['beta'], st['avg'])
            out = _stage_call(_fused_mm_ln_gelu_kernel, xp, consts,
                              st['out_dtype'], bm=bm, vmem_limit=vmem_limit)
        else:
            consts = (st['w'], st['b'])
            out = _stage_call(_mm_bias_kernel, xp, consts,
                              st['out_dtype'], bm=bm, vmem_limit=vmem_limit)
        # unpack lanes back to (rows, channels); padded rows are dropped
        # (contiguous reshape -> free)
        return out.reshape(-1, st['n_out'])[:M]

    # ------------------------------------------------------------------
    @partial(jax.jit, static_argnums=0)
    def __call__(self, x):
        # x: NCHW (B, in_chan, img_size, img_size), like the PyTorch module.
        B = x.shape[0]
        # Single NCHW->NHWC hop; cast to the compute dtype up front so all the
        # im2col / pad / reshape glue between kernels moves bf16 bytes.
        x = x.transpose(0, 2, 3, 1).astype(self.compute_dtype)
        for si, (k, s, p) in enumerate(self.cfg):
            st = self.stages[si]
            cols, H, W = _im2col_nhwc(x, k, k, s, p)
            y = self._run_stage(cols, st)           # (B*H*W, C_out)
            x = y.reshape(B, H, W, st['n_out'])     # stays channels-last
        # rows are already in "b (h w) c" order; stage-3 output is f32
        return x.reshape(B, -1, self.stages[-1]['n_out'])


# ----------------------------------------------------------------------------
# Pure-JAX reference (lax.conv) for correctness check
# ----------------------------------------------------------------------------
def _ref_forward(m, x):
    def conv(x, w, b, stride, pad):
        out = lax.conv_general_dilated(
            x, w, window_strides=(stride, stride),
            padding=[(pad, pad), (pad, pad)],
            dimension_numbers=('NCHW', 'OIHW', 'NCHW'))
        return out + b[None, :, None, None]

    def ln_gelu_nchw(x, g, beta):
        xt = x.transpose(0, 2, 3, 1)
        mean = jnp.mean(xt, axis=-1, keepdims=True)
        var = jnp.mean((xt - mean) ** 2, axis=-1, keepdims=True)
        y = (xt - mean) * lax.rsqrt(var + _LN_EPS) * g + beta
        y = 0.5 * y * (1.0 + lax.erf(y * _INV_SQRT2))
        return y.transpose(0, 3, 1, 2)

    x = ln_gelu_nchw(conv(x, m.w1, m.b1, 2, 3), m.g1, m.beta1)
    x = ln_gelu_nchw(conv(x, m.w2, m.b2, 2, 1), m.g2, m.beta2)
    k3 = m.cfg[2][0]
    x = conv(x, m.w3, m.b3, k3, 0)
    B, C, H, W = x.shape
    return x.transpose(0, 2, 3, 1).reshape(B, H * W, C)


if __name__ == "__main__":
    key = jax.random.PRNGKey(0)
    kx, kp = jax.random.split(key)

    # small config consistent with the module: img=16, patch=8, chan=4, embed=32
    B, C, S = 2, 4, 16
    x = jax.random.normal(kx, (B, C, S, S), jnp.float32)

    # f32 parity path: faithful to the PyTorch forward (tight tolerance).
    model_f32 = Patchify(img_size=S, patch_size=8, in_chan=C, embed_dim=32,
                         compute_dtype=jnp.float32, key=kp)
    out_f32 = jax.block_until_ready(model_f32(x))
    expected_shape = (B, model_f32.n_patches, 32)
    assert out_f32.shape == expected_shape, (out_f32.shape, expected_shape)

    ref = jax.block_until_ready(_ref_forward(model_f32, x))
    assert jnp.allclose(out_f32, ref, atol=1e-3, rtol=1e-3), \
        float(jnp.max(jnp.abs(out_f32 - ref)))

    # Default bf16 path (same params): half the DMA bytes end to end, f32
    # accumulation and f32 LN/GELU epilogue, bf16 intermediate stores.
    model = Patchify(img_size=S, patch_size=8, in_chan=C, embed_dim=32, key=kp)
    out = jax.block_until_ready(model(x))
    assert out.shape == expected_shape, (out.shape, expected_shape)
    assert bool(jnp.all(jnp.isfinite(out)))
    out32 = out.astype(jnp.float32)
    assert jnp.allclose(out32, ref, atol=1.5e-1, rtol=1.5e-1), \
        float(jnp.max(jnp.abs(out32 - ref)))

    print("KERNEL_OK")
</pallas_src>

<mosaic_0001>
module attributes {stable_mosaic.version = 11 : i64} {
  func.func @_fused_mm_ln_gelu_kernel(%arg0: i32, %arg1: memref<8x3200xf32, #tpu.memory_space<vmem>>, %arg2: memref<3200x128xf32, #tpu.memory_space<vmem>>, %arg3: memref<1x128xf32, #tpu.memory_space<vmem>>, %arg4: memref<1x128xf32, #tpu.memory_space<vmem>>, %arg5: memref<1x128xf32, #tpu.memory_space<vmem>>, %arg6: memref<128x128xf32, #tpu.memory_space<vmem>>, %arg7: memref<8x128xf32, #tpu.memory_space<vmem>>) attributes {dimension_semantics = [#tpu.dimension_semantics<parallel>], iteration_bounds = array<i64: 1>, scalar_prefetch = 0 : i64, scratch_operands = 0 : i64, tpu.core_type = #tpu.core_type<tc>, window_params = [{transform_indices = @transform_0, window_bounds = array<i64: 8, 3200>}, {pipeline_mode = #tpu.pipeline_mode<synchronous>, transform_indices = @transform_1, window_bounds = array<i64: 3200, 128>}, {pipeline_mode = #tpu.pipeline_mode<synchronous>, transform_indices = @transform_2, window_bounds = array<i64: 1, 128>}, {pipeline_mode = #tpu.pipeline_mode<synchronous>, transform_indices = @transform_3, window_bounds = array<i64: 1, 128>}, {pipeline_mode = #tpu.pipeline_mode<synchronous>, transform_indices = @transform_4, window_bounds = array<i64: 1, 128>}, {pipeline_mode = #tpu.pipeline_mode<synchronous>, transform_indices = @transform_5, window_bounds = array<i64: 128, 128>}, {transform_indices = @transform_6, window_bounds = array<i64: 8, 128>}]} {
    %c0 = arith.constant 0 : index
    %c0_0 = arith.constant 0 : index
    %0 = vector.load %arg1[%c0, %c0_0] : memref<8x3200xf32, #tpu.memory_space<vmem>>, vector<8x3200xf32>
    %c0_1 = arith.constant 0 : index
    %c0_2 = arith.constant 0 : index
    %1 = vector.load %arg2[%c0_1, %c0_2] : memref<3200x128xf32, #tpu.memory_space<vmem>>, vector<3200x128xf32>
    %cst = arith.constant dense<0.000000e+00> : vector<8x128xf32>
    %2 = tpu.matmul %0, %1, %cst {dimension_numbers = #tpu.dot_dimension_numbers<[1], [0], [0], [1], [0, 0, 1, 1], [], []>} : vector<8x3200xf32>, vector<3200x128xf32>, vector<8x128xf32> -> vector<8x128xf32>
    %c0_3 = arith.constant 0 : index
    %c0_4 = arith.constant 0 : index
    %3 = vector.load %arg3[%c0_3, %c0_4] : memref<1x128xf32, #tpu.memory_space<vmem>>, vector<1x128xf32>
    %4 = vector.broadcast %3 : vector<1x128xf32> to vector<8x128xf32>
    %5 = arith.addf %2, %4 : vector<8x128xf32>
    %c0_5 = arith.constant 0 : index
    %c0_6 = arith.constant 0 : index
    %6 = vector.load %arg6[%c0_5, %c0_6] : memref<128x128xf32, #tpu.memory_space<vmem>>, vector<128x128xf32>
    %cst_7 = arith.constant dense<0.000000e+00> : vector<8x128xf32>
    %7 = tpu.matmul %5, %6, %cst_7 {dimension_numbers = #tpu.dot_dimension_numbers<[1], [0], [0], [1], [0, 0, 1, 1], [], []>} : vector<8x128xf32>, vector<128x128xf32>, vector<8x128xf32> -> vector<8x128xf32>
    %8 = arith.subf %5, %7 : vector<8x128xf32>
    %9 = arith.mulf %8, %8 : vector<8x128xf32>
    %c0_8 = arith.constant 0 : index
    %c0_9 = arith.constant 0 : index
    %10 = vector.load %arg6[%c0_8, %c0_9] : memref<128x128xf32, #tpu.memory_space<vmem>>, vector<128x128xf32>
    %cst_10 = arith.constant dense<0.000000e+00> : vector<8x128xf32>
    %11 = tpu.matmul %9, %10, %cst_10 {dimension_numbers = #tpu.dot_dimension_numbers<[1], [0], [0], [1], [0, 0, 1, 1], [], []>} : vector<8x128xf32>, vector<128x128xf32>, vector<8x128xf32> -> vector<8x128xf32>
    %cst_11 = arith.constant 9.99999974E-6 : f32
    %12 = vector.broadcast %cst_11 : f32 to vector<8x128xf32>
    %13 = arith.addf %11, %12 : vector<8x128xf32>
    %14 = math.rsqrt %13 : vector<8x128xf32>
    %15 = arith.mulf %8, %14 : vector<8x128xf32>
    %c0_12 = arith.constant 0 : index
    %c0_13 = arith.constant 0 : index
    %16 = vector.load %arg4[%c0_12, %c0_13] : memref<1x128xf32, #tpu.memory_space<vmem>>, vector<1x128xf32>
    %17 = vector.broadcast %16 : vector<1x128xf32> to vector<8x128xf32>
    %18 = arith.mulf %15, %17 : vector<8x128xf32>
    %c0_14 = arith.constant 0 : index
    %c0_15 = arith.constant 0 : index
    %19 = vector.load %arg5[%c0_14, %c0_15] : memref<1x128xf32, #tpu.memory_space<vmem>>, vector<1x128xf32>
    %20 = vector.broadcast %19 : vector<1x128xf32> to vector<8x128xf32>
    %21 = arith.addf %18, %20 : vector<8x128xf32>
    %cst_16 = arith.constant 5.000000e-01 : f32
    %22 = vector.broadcast %cst_16 : f32 to vector<8x128xf32>
    %23 = arith.mulf %22, %21 : vector<8x128xf32>
    %cst_17 = arith.constant 0.707106769 : f32
    %24 = vector.broadcast %cst_17 : f32 to vector<8x128xf32>
    %25 = arith.mulf %21, %24 : vector<8x128xf32>
    %26 = math.erf %25 : vector<8x128xf32>
    %cst_18 = arith.constant 1.000000e+00 : f32
    %27 = vector.broadcast %cst_18 : f32 to vector<8x128xf32>
    %28 = arith.addf %27, %26 : vector<8x128xf32>
    %29 = arith.mulf %23, %28 : vector<8x128xf32>
    %c0_19 = arith.constant 0 : index
    %c0_20 = arith.constant 0 : index
    %30 = vector.load %arg7[%c0_19, %c0_20] : memref<8x128xf32, #tpu.memory_space<vmem>>, vector<8x128xf32>
    tpu.vector_store %arg7[%c0_19, %c0_20], %29 {strides = array<i32>} : memref<8x128xf32, #tpu.memory_space<vmem>>, vector<8x128xf32>,
    return
  }
  func.func @transform_0(%arg0: i32) -> (i32, i32) {
    %c0_i32 = arith.constant 0 : i32
    %c0_i32_0 = arith.constant 0 : i32
    return %arg0, %c0_i32 : i32, i32
  }
  func.func @transform_1(%arg0: i32) -> (i32, i32) {
    %c0_i32 = arith.constant 0 : i32
    %c0_i32_0 = arith.constant 0 : i32
    %c0_i32_1 = arith.constant 0 : i32
    return %c0_i32, %c0_i32_0 : i32, i32
  }
  func.func @transform_2(%arg0: i32) -> (i32, i32) {
    %c0_i32 = arith.constant 0 : i32
    %c0_i32_0 = arith.constant 0 : i32
    %c0_i32_1 = arith.constant 0 : i32
    return %c0_i32, %c0_i32_0 : i32, i32
  }
  func.func @transform_3(%arg0: i32) -> (i32, i32) {
    %c0_i32 = arith.constant 0 : i32
    %c0_i32_0 = arith.constant 0 : i32
    %c0_i32_1 = arith.constant 0 : i32
    return %c0_i32, %c0_i32_0 : i32, i32
  }
  func.func @transform_4(%arg0: i32) -> (i32, i32) {
    %c0_i32 = arith.constant 0 : i32
    %c0_i32_0 = arith.constant 0 : i32
    %c0_i32_1 = arith.constant 0 : i32
    return %c0_i32, %c0_i32_0 : i32, i32
  }
  func.func @transform_5(%arg0: i32) -> (i32, i32) {
    %c0_i32 = arith.constant 0 : i32
    %c0_i32_0 = arith.constant 0 : i32
    %c0_i32_1 = arith.constant 0 : i32
    return %c0_i32, %c0_i32_0 : i32, i32
  }
  func.func @transform_6(%arg0: i32) -> (i32, i32) {
    %c0_i32 = arith.constant 0 : i32
    %c0_i32_0 = arith.constant 0 : i32
    return %arg0, %c0_i32 : i32, i32
  }
}

module attributes {stable_mosaic.version = 11 : i64} {
  func.func @_fused_mm_ln_gelu_kernel(%arg0: i32, %arg1: memref<8x640xf32, #tpu.memory_space<vmem>>, %arg2: memref<640x128xf32, #tpu.memory_space<vmem>>, %arg3: memref<1x128xf32, #tpu.memory_space<vmem>>, %arg4: memref<1x128xf32, #tpu.memory_space<vmem>>, %arg5: memref<1x128xf32, #tpu.memory_space<vmem>>, %arg6: memref<128x128xf32, #tpu.memory_space<vmem>>, %arg7: memref<8x128xf32, #tpu.memory_space<vmem>>) attributes {dimension_semantics = [#tpu.dimension_semantics<parallel>], iteration_bounds = array<i64: 1>, scalar_prefetch = 0 : i64, scratch_operands = 0 : i64, tpu.core_type = #tpu.core_type<tc>, window_params = [{transform_indices = @transform_0, window_bounds = array<i64: 8, 640>}, {pipeline_mode = #tpu.pipeline_mode<synchronous>, transform_indices = @transform_1, window_bounds = array<i64: 640, 128>}, {pipeline_mode = #tpu.pipeline_mode<synchronous>, transform_indices = @transform_2, window_bounds = array<i64: 1, 128>}, {pipeline_mode = #tpu.pipeline_mode<synchronous>, transform_indices = @transform_3, window_bounds = array<i64: 1, 128>}, {pipeline_mode = #tpu.pipeline_mode<synchronous>, transform_indices = @transform_4, window_bounds = array<i64: 1, 128>}, {pipeline_mode = #tpu.pipeline_mode<synchronous>, transform_indices = @transform_5, window_bounds = array<i64: 128, 128>}, {transform_indices = @transform_6, window_bounds = array<i64: 8, 128>}]} {
    %c0 = arith.constant 0 : index
    %c0_0 = arith.constant 0 : index
    %0 = vector.load %arg1[%c0, %c0_0] : memref<8x640xf32, #tpu.memory_space<vmem>>, vector<8x640xf32>
    %c0_1 = arith.constant 0 : index
    %c0_2 = arith.constant 0 : index
    %1 = vector.load %arg2[%c0_1, %c0_2] : memref<640x128xf32, #tpu.memory_space<vmem>>, vector<640x128xf32>
    %cst = arith.constant dense<0.000000e+00> : vector<8x128xf32>
    %2 = tpu.matmul %0, %1, %cst {dimension_numbers = #tpu.dot_dimension_numbers<[1], [0], [0], [1], [0, 0, 1, 1], [], []>} : vector<8x640xf32>, vector<640x128xf32>, vector<8x128xf32> -> vector<8x128xf32>
    %c0_3 = arith.constant 0 : index
    %c0_4 = arith.constant 0 : index
    %3 = vector.load %arg3[%c0_3, %c0_4] : memref<1x128xf32, #tpu.memory_space<vmem>>, vector<1x128xf32>
    %4 = vector.broadcast %3 : vector<1x128xf32> to vector<8x128xf32>
    %5 = arith.addf %2, %4 : vector<8x128xf32>
    %c0_5 = arith.constant 0 : index
    %c0_6 = arith.constant 0 : index
    %6 = vector.load %arg6[%c0_5, %c0_6] : memref<128x128xf32, #tpu.memory_space<vmem>>, vector<128x128xf32>
    %cst_7 = arith.constant dense<0.000000e+00> : vector<8x128xf32>
    %7 = tpu.matmul %5, %6, %cst_7 {dimension_numbers = #tpu.dot_dimension_numbers<[1], [0], [0], [1], [0, 0, 1, 1], [], []>} : vector<8x128xf32>, vector<128x128xf32>, vector<8x128xf32> -> vector<8x128xf32>
    %8 = arith.subf %5, %7 : vector<8x128xf32>
    %9 = arith.mulf %8, %8 : vector<8x128xf32>
    %c0_8 = arith.constant 0 : index
    %c0_9 = arith.constant 0 : index
    %10 = vector.load %arg6[%c0_8, %c0_9] : memref<128x128xf32, #tpu.memory_space<vmem>>, vector<128x128xf32>
    %cst_10 = arith.constant dense<0.000000e+00> : vector<8x128xf32>
    %11 = tpu.matmul %9, %10, %cst_10 {dimension_numbers = #tpu.dot_dimension_numbers<[1], [0], [0], [1], [0, 0, 1, 1], [], []>} : vector<8x128xf32>, vector<128x128xf32>, vector<8x128xf32> -> vector<8x128xf32>
    %cst_11 = arith.constant 9.99999974E-6 : f32
    %12 = vector.broadcast %cst_11 : f32 to vector<8x128xf32>
    %13 = arith.addf %11, %12 : vector<8x128xf32>
    %14 = math.rsqrt %13 : vector<8x128xf32>
    %15 = arith.mulf %8, %14 : vector<8x128xf32>
    %c0_12 = arith.constant 0 : index
    %c0_13 = arith.constant 0 : index
    %16 = vector.load %arg4[%c0_12, %c0_13] : memref<1x128xf32, #tpu.memory_space<vmem>>, vector<1x128xf32>
    %17 = vector.broadcast %16 : vector<1x128xf32> to vector<8x128xf32>
    %18 = arith.mulf %15, %17 : vector<8x128xf32>
    %c0_14 = arith.constant 0 : index
    %c0_15 = arith.constant 0 : index
    %19 = vector.load %arg5[%c0_14, %c0_15] : memref<1x128xf32, #tpu.memory_space<vmem>>, vector<1x128xf32>
    %20 = vector.broadcast %19 : vector<1x128xf32> to vector<8x128xf32>
    %21 = arith.addf %18, %20 : vector<8x128xf32>
    %cst_16 = arith.constant 5.000000e-01 : f32
    %22 = vector.broadcast %cst_16 : f32 to vector<8x128xf32>
    %23 = arith.mulf %22, %21 : vector<8x128xf32>
    %cst_17 = arith.constant 0.707106769 : f32
    %24 = vector.broadcast %cst_17 : f32 to vector<8x128xf32>
    %25 = arith.mulf %21, %24 : vector<8x128xf32>
    %26 = math.erf %25 : vector<8x128xf32>
    %cst_18 = arith.constant 1.000000e+00 : f32
    %27 = vector.broadcast %cst_18 : f32 to vector<8x128xf32>
    %28 = arith.addf %27, %26 : vector<8x128xf32>
    %29 = arith.mulf %23, %28 : vector<8x128xf32>
    %c0_19 = arith.constant 0 : index
    %c0_20 = arith.constant 0 : index
    %30 = vector.load %arg7[%c0_19, %c0_20] : memref<8x128xf32, #tpu.memory_space<vmem>>, vector<8x128xf32>
    tpu.vector_store %arg7[%c0_19, %c0_20], %29 {strides = array<i32>} : memref<8x128xf32, #tpu.memory_space<vmem>>, vector<8x128xf32>,
    return
  }
  func.func @transform_0(%arg0: i32) -> (i32, i32) {
    %c0_i32 = arith.constant 0 : i32
    %c0_i32_0 = arith.constant 0 : i32
    return %arg0, %c0_i32 : i32, i32
  }
  func.func @transform_1(%arg0: i32) -> (i32, i32) {
    %c0_i32 = arith.constant 0 : i32
    %c0_i32_0 = arith.constant 0 : i32
    %c0_i32_1 = arith.constant 0 : i32
    return %c0_i32, %c0_i32_0 : i32, i32
  }
  func.func @transform_2(%arg0: i32) -> (i32, i32) {
    %c0_i32 = arith.constant 0 : i32
    %c0_i32_0 = arith.constant 0 : i32
    %c0_i32_1 = arith.constant 0 : i32
    return %c0_i32, %c0_i32_0 : i32, i32
  }
  func.func @transform_3(%arg0: i32) -> (i32, i32) {
    %c0_i32 = arith.constant 0 : i32
    %c0_i32_0 = arith.constant 0 : i32
    %c0_i32_1 = arith.constant 0 : i32
    return %c0_i32, %c0_i32_0 : i32, i32
  }
  func.func @transform_4(%arg0: i32) -> (i32, i32) {
    %c0_i32 = arith.constant 0 : i32
    %c0_i32_0 = arith.constant 0 : i32
    %c0_i32_1 = arith.constant 0 : i32
    return %c0_i32, %c0_i32_0 : i32, i32
  }
  func.func @transform_5(%arg0: i32) -> (i32, i32) {
    %c0_i32 = arith.constant 0 : i32
    %c0_i32_0 = arith.constant 0 : i32
    %c0_i32_1 = arith.constant 0 : i32
    return %c0_i32, %c0_i32_0 : i32, i32
  }
  func.func @transform_6(%arg0: i32) -> (i32, i32) {
    %c0_i32 = arith.constant 0 : i32
    %c0_i32_0 = arith.constant 0 : i32
    return %arg0, %c0_i32 : i32, i32
  }
}

module attributes {stable_mosaic.version = 11 : i64} {
  func.func @_mm_bias_kernel(%arg0: i32, %arg1: memref<8x256xf32, #tpu.memory_space<vmem>>, %arg2: memref<256x128xf32, #tpu.memory_space<vmem>>, %arg3: memref<1x128xf32, #tpu.memory_space<vmem>>, %arg4: memref<8x128xf32, #tpu.memory_space<vmem>>) attributes {dimension_semantics = [#tpu.dimension_semantics<parallel>], iteration_bounds = array<i64: 1>, scalar_prefetch = 0 : i64, scratch_operands = 0 : i64, tpu.core_type = #tpu.core_type<tc>, window_params = [{transform_indices = @transform_0, window_bounds = array<i64: 8, 256>}, {pipeline_mode = #tpu.pipeline_mode<synchronous>, transform_indices = @transform_1, window_bounds = array<i64: 256, 128>}, {pipeline_mode = #tpu.pipeline_mode<synchronous>, transform_indices = @transform_2, window_bounds = array<i64: 1, 128>}, {transform_indices = @transform_3, window_bounds = array<i64: 8, 128>}]} {
    %c0 = arith.constant 0 : index
    %c0_0 = arith.constant 0 : index
    %0 = vector.load %arg1[%c0, %c0_0] : memref<8x256xf32, #tpu.memory_space<vmem>>, vector<8x256xf32>
    %c0_1 = arith.constant 0 : index
    %c0_2 = arith.constant 0 : index
    %1 = vector.load %arg2[%c0_1, %c0_2] : memref<256x128xf32, #tpu.memory_space<vmem>>, vector<256x128xf32>
    %cst = arith.constant dense<0.000000e+00> : vector<8x128xf32>
    %2 = tpu.matmul %0, %1, %cst {dimension_numbers = #tpu.dot_dimension_numbers<[1], [0], [0], [1], [0, 0, 1, 1], [], []>} : vector<8x256xf32>, vector<256x128xf32>, vector<8x128xf32> -> vector<8x128xf32>
    %c0_3 = arith.constant 0 : index
    %c0_4 = arith.constant 0 : index
    %3 = vector.load %arg3[%c0_3, %c0_4] : memref<1x128xf32, #tpu.memory_space<vmem>>, vector<1x128xf32>
    %4 = vector.broadcast %3 : vector<1x128xf32> to vector<8x128xf32>
    %5 = arith.addf %2, %4 : vector<8x128xf32>
    %c0_5 = arith.constant 0 : index
    %c0_6 = arith.constant 0 : index
    %6 = vector.load %arg4[%c0_5, %c0_6] : memref<8x128xf32, #tpu.memory_space<vmem>>, vector<8x128xf32>
    tpu.vector_store %arg4[%c0_5, %c0_6], %5 {strides = array<i32>} : memref<8x128xf32, #tpu.memory_space<vmem>>, vector<8x128xf32>,
    return
  }
  func.func @transform_0(%arg0: i32) -> (i32, i32) {
    %c0_i32 = arith.constant 0 : i32
    %c0_i32_0 = arith.constant 0 : i32
    return %arg0, %c0_i32 : i32, i32
  }
  func.func @transform_1(%arg0: i32) -> (i32, i32) {
    %c0_i32 = arith.constant 0 : i32
    %c0_i32_0 = arith.constant 0 : i32
    %c0_i32_1 = arith.constant 0 : i32
    return %c0_i32, %c0_i32_0 : i32, i32
  }
  func.func @transform_2(%arg0: i32) -> (i32, i32) {
    %c0_i32 = arith.constant 0 : i32
    %c0_i32_0 = arith.constant 0 : i32
    %c0_i32_1 = arith.constant 0 : i32
    return %c0_i32, %c0_i32_0 : i32, i32
  }
  func.func @transform_3(%arg0: i32) -> (i32, i32) {
    %c0_i32 = arith.constant 0 : i32
    %c0_i32_0 = arith.constant 0 : i32
    return %arg0, %c0_i32 : i32, i32
  }
}

</mosaic_0001>

<llo_original>
// kernel: a_call__.3
$region0: #{a_call__.3}
  #allocation0 [shape = 'u32[]', space=smem, size = 0x4, offset = 0x4, fixed_abs, tag = 'smem constant byte address 0x4 - core index']
  #allocation1 [shape = 'u32[144,128]{1,0:T(1,128)}', space=vmem, size = 0x12000, scoped, tag = 'internal scratch']
  %s0 = inlined_call_operand.vmem [shape: f32[8,3200], index: 0, kind: input, shape index: {}]
  %s1 = inlined_call_operand.vmem [shape: f32[3200,128], index: 1, kind: input, shape index: {}]
  %s2 = inlined_call_operand.vmem [shape: f32[1,128], index: 2, kind: input, shape index: {}]
  %s3 = inlined_call_operand.vmem [shape: f32[1,128], index: 3, kind: input, shape index: {}]
  %s4 = inlined_call_operand.vmem [shape: f32[1,128], index: 4, kind: input, shape index: {}]
  %s5 = inlined_call_operand.vmem [shape: f32[128,128], index: 5, kind: input, shape index: {}]
  %s6 = inlined_call_operand.vmem [shape: f32[8,128], index: 6, kind: output, shape index: {}]
  %s7 = sld [smem:[#allocation0]]
  $region34: #{a_call__.3} parent=0
    _
  %s9 = ssub.s32 1, %s7
  %s10 = scalar_select 0, %s9, %s7
  // Predicated region
  $region2: #{a_call__.3} parent=0 // pred_check
    _
  $region3: #{a_call__.3} parent=0 // pred_check_branch
    %12 = sbr.rel (0) target = $region5
  $region4: #{a_call__.3} parent=0 // pred_region
    _
  $region5: #{a_call__.3} parent=0 // pred_fallthru
    _
  // Predicated region
  $region6: #{a_call__.3} parent=0 // pred_check
    _
  $region7: #{a_call__.3} parent=0 // pred_check_branch
    %14 = sbr.rel (0) target = $region9
  $region8: #{a_call__.3} parent=0 // pred_region
    _
  $region9: #{a_call__.3} parent=0 // pred_fallthru
    _
  // Predicated region
  $region10: #{a_call__.3} parent=0 // pred_check
    _
  $region11: #{a_call__.3} parent=0 // pred_check_branch
    %16 = sbr.rel (0) target = $region13
  $region12: #{a_call__.3} parent=0 // pred_region
    _
  $region13: #{a_call__.3} parent=0 // pred_fallthru
    _
  // Predicated region
  $region14: #{a_call__.3} parent=0 // pred_check
    _
  $region15: #{a_call__.3} parent=0 // pred_check_branch
    %18 = sbr.rel (0) target = $region17
  $region16: #{a_call__.3} parent=0 // pred_region
    _
  $region17: #{a_call__.3} parent=0 // pred_fallthru
    _
  // Predicated region
  $region18: #{a_call__.3} parent=0 // pred_check
    _
  $region19: #{a_call__.3} parent=0 // pred_check_branch
    %20 = sbr.rel (0) target = $region21
  $region20: #{a_call__.3} parent=0 // pred_region
    _
  $region21: #{a_call__.3} parent=0 // pred_fallthru
    _
  // Predicated region
  $region22: #{a_call__.3} parent=0 // pred_check
    _
  $region23: #{a_call__.3} parent=0 // pred_check_branch
    %22 = sbr.rel (0) target = $region25
  $region24: #{a_call__.3} parent=0 // pred_region
    _
  $region25: #{a_call__.3} parent=0 // pred_fallthru
    _
  %v23 = vld [vmem:[%s0] sm:$0xff]
  %v24 = vld [vmem:[%s0 + $0x8] sm:$0xff]
  %v25 = vld [vmem:[%s0 + $0x10] sm:$0xff]
  %v26 = vld [vmem:[%s0 + $0x18] sm:$0xff]
  %v27 = vld [vmem:[%s0 + $0x20] sm:$0xff]
  %v28 = vld [vmem:[%s0 + $0x28] sm:$0xff]
  %v29 = vld [vmem:[%s0 + $0x30] sm:$0xff]
  %v30 = vld [vmem:[%s0 + $0x38] sm:$0xff]
  %v31 = vld [vmem:[%s0 + $0x40] sm:$0xff]
  %v32 = vld [vmem:[%s0 + $0x48] sm:$0xff]
  %v33 = vld [vmem:[%s0 + $0x50] sm:$0xff]
  %v34 = vld [vmem:[%s0 + $0x58] sm:$0xff]
  %v35 = vld [vmem:[%s0 + $0x60] sm:$0xff]
  %v36 = vld [vmem:[%s0 + $0x68] sm:$0xff]
  %v37 = vld [vmem:[%s0 + $0x70] sm:$0xff]
  %v38 = vld [vmem:[%s0 + $0x78] sm:$0xff]
  %v39 = vld [vmem:[%s0 + $0x80] sm:$0xff]
  %v40 = vld [vmem:[%s0 + $0x88] sm:$0xff]
  %v41 = vld [vmem:[%s0 + $0x90] sm:$0xff]
  %v42 = vld [vmem:[%s0 + $0x98] sm:$0xff]
  %v43 = vld [vmem:[%s0 + $0xa0] sm:$0xff]
  %v44 = vld [vmem:[%s0 + $0xa8] sm:$0xff]
  %v45 = vld [vmem:[%s0 + $0xb0] sm:$0xff]
  %v46 = vld [vmem:[%s0 + $0xb8] sm:$0xff]
  %v47 = vld [vmem:[%s0 + $0xc0] sm:$0xff]
  %v48 = vld [vmem:[%s1] sm:$0xff]
  %v49 = vld [vmem:[%s1 + $0x8] sm:$0xff]
  %v50 = vld [vmem:[%s1 + $0x10] sm:$0xff]
  %v51 = vld [vmem:[%s1 + $0x18] sm:$0xff]
  %v52 = vld [vmem:[%s1 + $0x20] sm:$0xff]
  %v53 = vld [vmem:[%s1 + $0x28] sm:$0xff]
  %v54 = vld [vmem:[%s1 + $0x30] sm:$0xff]
  %v55 = vld [vmem:[%s1 + $0x38] sm:$0xff]
  %v56 = vld [vmem:[%s1 + $0x40] sm:$0xff]
  %v57 = vld [vmem:[%s1 + $0x48] sm:$0xff]
  %v58 = vld [vmem:[%s1 + $0x50] sm:$0xff]
  %v59 = vld [vmem:[%s1 + $0x58] sm:$0xff]
  %v60 = vld [vmem:[%s1 + $0x60] sm:$0xff]
  %v61 = vld [vmem:[%s1 + $0x68] sm:$0xff]
  %v62 = vld [vmem:[%s1 + $0x70] sm:$0xff]
  %v63 = vld [vmem:[%s1 + $0x78] sm:$0xff]
  %v64 = vld [vmem:[%s1 + $0x80] sm:$0xff]
  %v65 = vld [vmem:[%s1 + $0x88] sm:$0xff]
  %v66 = vld [vmem:[%s1 + $0x90] sm:$0xff]
  %v67 = vld [vmem:[%s1 + $0x98] sm:$0xff]
  %v68 = vld [vmem:[%s1 + $0xa0] sm:$0xff]
  %v69 = vld [vmem:[%s1 + $0xa8] sm:$0xff]
  %v70 = vld [vmem:[%s1 + $0xb0] sm:$0xff]
  %v71 = vld [vmem:[%s1 + $0xb8] sm:$0xff]
  %v72 = vld [vmem:[%s1 + $0xc0] sm:$0xff]
  %v73 = vld [vmem:[%s1 + $0xc8] sm:$0xff]
  %v74 = vld [vmem:[%s1 + $0xd0] sm:$0xff]
  %v75 = vld [vmem:[%s1 + $0xd8] sm:$0xff]
  %v76 = vld [vmem:[%s1 + $0xe0] sm:$0xff]
  %v77 = vld [vmem:[%s1 + $0xe8] sm:$0xff]
  %v78 = vld [vmem:[%s1 + $0xf0] sm:$0xff]
  %v79 = vld [vmem:[%s1 + $0xf8] sm:$0xff]
  %v80 = vld [vmem:[%s1 + $0x100] sm:$0xff]
  %v81 = vld [vmem:[%s1 + $0x108] sm:$0xff]
  %v82 = vld [vmem:[%s1 + $0x110] sm:$0xff]
  %v83 = vld [vmem:[%s1 + $0x118] sm:$0xff]
  %v84 = vld [vmem:[%s1 + $0x120] sm:$0xff]
  %v85 = vld [vmem:[%s1 + $0x128] sm:$0xff]
  %v86 = vld [vmem:[%s1 + $0x130] sm:$0xff]
  %v87 = vld [vmem:[%s1 + $0x138] sm:$0xff]
  %v88 = vld [vmem:[%s1 + $0x140] sm:$0xff]
  %v89 = vld [vmem:[%s1 + $0x148] sm:$0xff]
  %v90 = vld [vmem:[%s1 + $0x150] sm:$0xff]
  %v91 = vld [vmem:[%s1 + $0x158] sm:$0xff]
  %v92 = vld [vmem:[%s1 + $0x160] sm:$0xff]
  %v93 = vld [vmem:[%s1 + $0x168] sm:$0xff]
  %v94 = vld [vmem:[%s1 + $0x170] sm:$0xff]
  %v95 = vld [vmem:[%s1 + $0x178] sm:$0xff]
  %v96 = vld [vmem:[%s1 + $0x180] sm:$0xff]
  %v97 = vld [vmem:[%s1 + $0x188] sm:$0xff]
  %v98 = vld [vmem:[%s1 + $0x190] sm:$0xff]
  %v99 = vld [vmem:[%s1 + $0x198] sm:$0xff]
  %v100 = vld [vmem:[%s1 + $0x1a0] sm:$0xff]
  %v101 = vld [vmem:[%s1 + $0x1a8] sm:$0xff]
  %v102 = vld [vmem:[%s1 + $0x1b0] sm:$0xff]
  %v103 = vld [vmem:[%s1 + $0x1b8] sm:$0xff]
  %v104 = vld [vmem:[%s1 + $0x1c0] sm:$0xff]
  %v105 = vld [vmem:[%s1 + $0x1c8] sm:$0xff]
  %v106 = vld [vmem:[%s1 + $0x1d0] sm:$0xff]
  %v107 = vld [vmem:[%s1 + $0x1d8] sm:$0xff]
  %v108 = vld [vmem:[%s1 + $0x1e0] sm:$0xff]
  %v109 = vld [vmem:[%s1 + $0x1e8] sm:$0xff]
  %v110 = vld [vmem:[%s1 + $0x1f0] sm:$0xff]
  %v111 = vld [vmem:[%s1 + $0x1f8] sm:$0xff]
  %v112 = vld [vmem:[%s1 + $0x200] sm:$0xff]
  %v113 = vld [vmem:[%s1 + $0x208] sm:$0xff]
  %v114 = vld [vmem:[%s1 + $0x210] sm:$0xff]
  %v115 = vld [vmem:[%s1 + $0x218] sm:$0xff]
  %v116 = vld [vmem:[%s1 + $0x220] sm:$0xff]
  %v117 = vld [vmem:[%s1 + $0x228] sm:$0xff]
  %v118 = vld [vmem:[%s1 + $0x230] sm:$0xff]
  %v119 = vld [vmem:[%s1 + $0x238] sm:$0xff]
  %v120 = vld [vmem:[%s1 + $0x240] sm:$0xff]
  %v121 = vld [vmem:[%s1 + $0x248] sm:$0xff]
  %v122 = vld [vmem:[%s1 + $0x250] sm:$0xff]
  %v123 = vld [vmem:[%s1 + $0x258] sm:$0xff]
  %v124 = vld [vmem:[%s1 + $0x260] sm:$0xff]
  %v125 = vld [vmem:[%s1 + $0x268] sm:$0xff]
  %v126 = vld [vmem:[%s1 + $0x270] sm:$0xff]
  %v127 = vld [vmem:[%s1 + $0x278] sm:$0xff]
  %v128 = vld [vmem:[%s1 + $0x280] sm:$0xff]
  %v129 = vld [vmem:[%s1 + $0x288] sm:$0xff]
  %v130 = vld [vmem:[%s1 + $0x290] sm:$0xff]
  %v131 = vld [vmem:[%s1 + $0x298] sm:$0xff]
  %v132 = vld [vmem:[%s1 + $0x2a0] sm:$0xff]
  %v133 = vld [vmem:[%s1 + $0x2a8] sm:$0xff]
  %v134 = vld [vmem:[%s1 + $0x2b0] sm:$0xff]
  %v135 = vld [vmem:[%s1 + $0x2b8] sm:$0xff]
  %v136 = vld [vmem:[%s1 + $0x2c0] sm:$0xff]
  %v137 = vld [vmem:[%s1 + $0x2c8] sm:$0xff]
  %v138 = vld [vmem:[%s1 + $0x2d0] sm:$0xff]
  %v139 = vld [vmem:[%s1 + $0x2d8] sm:$0xff]
  %v140 = vld [vmem:[%s1 + $0x2e0] sm:$0xff]
  %v141 = vld [vmem:[%s1 + $0x2e8] sm:$0xff]
  %v142 = vld [vmem:[%s1 + $0x2f0] sm:$0xff]
  %v143 = vld [vmem:[%s1 + $0x2f8] sm:$0xff]
  %v144 = vld [vmem:[%s1 + $0x300] sm:$0xff]
  %v145 = vld [vmem:[%s1 + $0x308] sm:$0xff]
  %v146 = vld [vmem:[%s1 + $0x310] sm:$0xff]
  %v147 = vld [vmem:[%s1 + $0x318] sm:$0xff]
  %v148 = vld [vmem:[%s1 + $0x320] sm:$0xff]
  %v149 = vld [vmem:[%s1 + $0x328] sm:$0xff]
  %v150 = vld [vmem:[%s1 + $0x330] sm:$0xff]
  %v151 = vld [vmem:[%s1 + $0x338] sm:$0xff]
  %v152 = vld [vmem:[%s1 + $0x340] sm:$0xff]
  %v153 = vld [vmem:[%s1 + $0x348] sm:$0xff]
  %v154 = vld [vmem:[%s1 + $0x350] sm:$0xff]
  %v155 = vld [vmem:[%s1 + $0x358] sm:$0xff]
  %v156 = vld [vmem:[%s1 + $0x360] sm:$0xff]
  %v157 = vld [vmem:[%s1 + $0x368] sm:$0xff]
  %v158 = vld [vmem:[%s1 + $0x370] sm:$0xff]
  %v159 = vld [vmem:[%s1 + $0x378] sm:$0xff]
  %v160 = vld [vmem:[%s1 + $0x380] sm:$0xff]
  %v161 = vld [vmem:[%s1 + $0x388] sm:$0xff]
  %v162 = vld [vmem:[%s1 + $0x390] sm:$0xff]
  %v163 = vld [vmem:[%s1 + $0x398] sm:$0xff]
  %v164 = vld [vmem:[%s1 + $0x3a0] sm:$0xff]
  %v165 = vld [vmem:[%s1 + $0x3a8] sm:$0xff]
  %v166 = vld [vmem:[%s1 + $0x3b0] sm:$0xff]
  %v167 = vld [vmem:[%s1 + $0x3b8] sm:$0xff]
  %v168 = vld [vmem:[%s1 + $0x3c0] sm:$0xff]
  %v169 = vld [vmem:[%s1 + $0x3c8] sm:$0xff]
  %v170 = vld [vmem:[%s1 + $0x3d0] sm:$0xff]
  %v171 = vld [vmem:[%s1 + $0x3d8] sm:$0xff]
  %v172 = vld [vmem:[%s1 + $0x3e0] sm:$0xff]
  %v173 = vld [vmem:[%s1 + $0x3e8] sm:$0xff]
  %v174 = vld [vmem:[%s1 + $0x3f0] sm:$0xff]
  %v175 = vld [vmem:[%s1 + $0x3f8] sm:$0xff]
  %v176 = vld [vmem:[%s1 + $0x400] sm:$0xff]
  %v177 = vld [vmem:[%s1 + $0x408] sm:$0xff]
  %v178 = vld [vmem:[%s1 + $0x410] sm:$0xff]
  %v179 = vld [vmem:[%s1 + $0x418] sm:$0xff]
  %v180 = vld [vmem:[%s1 + $0x420] sm:$0xff]
  %v181 = vld [vmem:[%s1 + $0x428] sm:$0xff]
  %v182 = vld [vmem:[%s1 + $0x430] sm:$0xff]
  %v183 = vld [vmem:[%s1 + $0x438] sm:$0xff]
  %v184 = vld [vmem:[%s1 + $0x440] sm:$0xff]
  %v185 = vld [vmem:[%s1 + $0x448] sm:$0xff]
  %v186 = vld [vmem:[%s1 + $0x450] sm:$0xff]
  %v187 = vld [vmem:[%s1 + $0x458] sm:$0xff]
  %v188 = vld [vmem:[%s1 + $0x460] sm:$0xff]
  %v189 = vld [vmem:[%s1 + $0x468] sm:$0xff]
  %v190 = vld [vmem:[%s1 + $0x470] sm:$0xff]
  %v191 = vld [vmem:[%s1 + $0x478] sm:$0xff]
  %v192 = vld [vmem:[%s1 + $0x480] sm:$0xff]
  %v193 = vld [vmem:[%s1 + $0x488] sm:$0xff]
  %v194 = vld [vmem:[%s1 + $0x490] sm:$0xff]
  %v195 = vld [vmem:[%s1 + $0x498] sm:$0xff]
  %v196 = vld [vmem:[%s1 + $0x4a0] sm:$0xff]
  %v197 = vld [vmem:[%s1 + $0x4a8] sm:$0xff]
  %v198 = vld [vmem:[%s1 + $0x4b0] sm:$0xff]
  %v199 = vld [vmem:[%s1 + $0x4b8] sm:$0xff]
  %v200 = vld [vmem:[%s1 + $0x4c0] sm:$0xff]
  %v201 = vld [vmem:[%s1 + $0x4c8] sm:$0xff]
  %v202 = vld [vmem:[%s1 + $0x4d0] sm:$0xff]
  %v203 = vld [vmem:[%s1 + $0x4d8] sm:$0xff]
  %v204 = vld [vmem:[%s1 + $0x4e0] sm:$0xff]
  %v205 = vld [vmem:[%s1 + $0x4e8] sm:$0xff]
  %v206 = vld [vmem:[%s1 + $0x4f0] sm:$0xff]
  %v207 = vld [vmem:[%s1 + $0x4f8] sm:$0xff]
  %v208 = vld [vmem:[%s1 + $0x500] sm:$0xff]
  %v209 = vld [vmem:[%s1 + $0x508] sm:$0xff]
  %v210 = vld [vmem:[%s1 + $0x510] sm:$0xff]
  %v211 = vld [vmem:[%s1 + $0x518] sm:$0xff]
  %v212 = vld [vmem:[%s1 + $0x520] sm:$0xff]
  %v213 = vld [vmem:[%s1 + $0x528] sm:$0xff]
  %v214 = vld [vmem:[%s1 + $0x530] sm:$0xff]
  %v215 = vld [vmem:[%s1 + $0x538] sm:$0xff]
  %v216 = vld [vmem:[%s1 + $0x540] sm:$0xff]
  %v217 = vld [vmem:[%s1 + $0x548] sm:$0xff]
  %v218 = vld [vmem:[%s1 + $0x550] sm:$0xff]
  %v219 = vld [vmem:[%s1 + $0x558] sm:$0xff]
  %v220 = vld [vmem:[%s1 + $0x560] sm:$0xff]
  %v221 = vld [vmem:[%s1 + $0x568] sm:$0xff]
  %v222 = vld [vmem:[%s1 + $0x570] sm:$0xff]
  %v223 = vld [vmem:[%s1 + $0x578] sm:$0xff]
  %v224 = vld [vmem:[%s1 + $0x580] sm:$0xff]
  %v225 = vld [vmem:[%s1 + $0x588] sm:$0xff]
  %v226 = vld [vmem:[%s1 + $0x590] sm:$0xff]
  %v227 = vld [vmem:[%s1 + $0x598] sm:$0xff]
  %v228 = vld [vmem:[%s1 + $0x5a0] sm:$0xff]
  %v229 = vld [vmem:[%s1 + $0x5a8] sm:$0xff]
  %v230 = vld [vmem:[%s1 + $0x5b0] sm:$0xff]
  %v231 = vld [vmem:[%s1 + $0x5b8] sm:$0xff]
  %v232 = vld [vmem:[%s1 + $0x5c0] sm:$0xff]
  %v233 = vld [vmem:[%s1 + $0x5c8] sm:$0xff]
  %v234 = vld [vmem:[%s1 + $0x5d0] sm:$0xff]
  %v235 = vld [vmem:[%s1 + $0x5d8] sm:$0xff]
  %v236 = vld [vmem:[%s1 + $0x5e0] sm:$0xff]
  %v237 = vld [vmem:[%s1 + $0x5e8] sm:$0xff]
  %v238 = vld [vmem:[%s1 + $0x5f0] sm:$0xff]
  %v239 = vld [vmem:[%s1 + $0x5f8] sm:$0xff]
  %v240 = vld [vmem:[%s1 + $0x600] sm:$0xff]
  %v241 = vld [vmem:[%s1 + $0x608] sm:$0xff]
  %v242 = vld [vmem:[%s1 + $0x610] sm:$0xff]
  %v243 = vld [vmem:[%s1 + $0x618] sm:$0xff]
  %v244 = vld [vmem:[%s1 + $0x620] sm:$0xff]
  %v245 = vld [vmem:[%s1 + $0x628] sm:$0xff]
  %v246 = vld [vmem:[%s1 + $0x630] sm:$0xff]
  %v247 = vld [vmem:[%s1 + $0x638] sm:$0xff]
  %v248 = vld [vmem:[%s1 + $0x640] sm:$0xff]
  %v249 = vld [vmem:[%s1 + $0x648] sm:$0xff]
  %v250 = vld [vmem:[%s1 + $0x650] sm:$0xff]
  %v251 = vld [vmem:[%s1 + $0x658] sm:$0xff]
  %v252 = vld [vmem:[%s1 + $0x660] sm:$0xff]
  %v253 = vld [vmem:[%s1 + $0x668] sm:$0xff]
  %v254 = vld [vmem:[%s1 + $0x670] sm:$0xff]
  %v255 = vld [vmem:[%s1 + $0x678] sm:$0xff]
  %v256 = vld [vmem:[%s1 + $0x680] sm:$0xff]
  %v257 = vld [vmem:[%s1 + $0x688] sm:$0xff]
  %v258 = vld [vmem:[%s1 + $0x690] sm:$0xff]
  %v259 = vld [vmem:[%s1 + $0x698] sm:$0xff]
  %v260 = vld [vmem:[%s1 + $0x6a0] sm:$0xff]
  %v261 = vld [vmem:[%s1 + $0x6a8] sm:$0xff]
  %v262 = vld [vmem:[%s1 + $0x6b0] sm:$0xff]
  %v263 = vld [vmem:[%s1 + $0x6b8] sm:$0xff]
  %v264 = vld [vmem:[%s1 + $0x6c0] sm:$0xff]
  %v265 = vld [vmem:[%s1 + $0x6c8] sm:$0xff]
  %v266 = vld [vmem:[%s1 + $0x6d0] sm:$0xff]
  %v267 = vld [vmem:[%s1 + $0x6d8] sm:$0xff]
  %v268 = vld [vmem:[%s1 + $0x6e0] sm:$0xff]
  %v269 = vld [vmem:[%s1 + $0x6e8] sm:$0xff]
  %v270 = vld [vmem:[%s1 + $0x6f0] sm:$0xff]
  %v271 = vld [vmem:[%s1 + $0x6f8] sm:$0xff]
  %v272 = vld [vmem:[%s1 + $0x700] sm:$0xff]
  %v273 = vld [vmem:[%s1 + $0x708] sm:$0xff]
  %v274 = vld [vmem:[%s1 + $0x710] sm:$0xff]
  %v275 = vld [vmem:[%s1 + $0x718] sm:$0xff]
  %v276 = vld [vmem:[%s1 + $0x720] sm:$0xff]
  %v277 = vld [vmem:[%s1 + $0x728] sm:$0xff]
  %v278 = vld [vmem:[%s1 + $0x730] sm:$0xff]
  %v279 = vld [vmem:[%s1 + $0x738] sm:$0xff]
  %v280 = vld [vmem:[%s1 + $0x740] sm:$0xff]
  %v281 = vld [vmem:[%s1 + $0x748] sm:$0xff]
  %v282 = vld [vmem:[%s1 + $0x750] sm:$0xff]
  %v283 = vld [vmem:[%s1 + $0x758] sm:$0xff]
  %v284 = vld [vmem:[%s1 + $0x760] sm:$0xff]
  %v285 = vld [vmem:[%s1 + $0x768] sm:$0xff]
  %v286 = vld [vmem:[%s1 + $0x770] sm:$0xff]
  %v287 = vld [vmem:[%s1 + $0x778] sm:$0xff]
  %v288 = vld [vmem:[%s1 + $0x780] sm:$0xff]
  %v289 = vld [vmem:[%s1 + $0x788] sm:$0xff]
  %v290 = vld [vmem:[%s1 + $0x790] sm:$0xff]
  %v291 = vld [vmem:[%s1 + $0x798] sm:$0xff]
  %v292 = vld [vmem:[%s1 + $0x7a0] sm:$0xff]
  %v293 = vld [vmem:[%s1 + $0x7a8] sm:$0xff]
  %v294 = vld [vmem:[%s1 + $0x7b0] sm:$0xff]
  %v295 = vld [vmem:[%s1 + $0x7b8] sm:$0xff]
  %v296 = vld [vmem:[%s1 + $0x7c0] sm:$0xff]
  %v297 = vld [vmem:[%s1 + $0x7c8] sm:$0xff]
  %v298 = vld [vmem:[%s1 + $0x7d0] sm:$0xff]
  %v299 = vld [vmem:[%s1 + $0x7d8] sm:$0xff]
  %v300 = vld [vmem:[%s1 + $0x7e0] sm:$0xff]
  %v301 = vld [vmem:[%s1 + $0x7e8] sm:$0xff]
  %v302 = vld [vmem:[%s1 + $0x7f0] sm:$0xff]
  %v303 = vld [vmem:[%s1 + $0x7f8] sm:$0xff]
  %v304 = vld [vmem:[%s1 + $0x800] sm:$0xff]
  %v305 = vld [vmem:[%s1 + $0x808] sm:$0xff]
  %v306 = vld [vmem:[%s1 + $0x810] sm:$0xff]
  %v307 = vld [vmem:[%s1 + $0x818] sm:$0xff]
  %v308 = vld [vmem:[%s1 + $0x820] sm:$0xff]
  %v309 = vld [vmem:[%s1 + $0x828] sm:$0xff]
  %v310 = vld [vmem:[%s1 + $0x830] sm:$0xff]
  %v311 = vld [vmem:[%s1 + $0x838] sm:$0xff]
  %v312 = vld [vmem:[%s1 + $0x840] sm:$0xff]
  %v313 = vld [vmem:[%s1 + $0x848] sm:$0xff]
  %v314 = vld [vmem:[%s1 + $0x850] sm:$0xff]
  %v315 = vld [vmem:[%s1 + $0x858] sm:$0xff]
  %v316 = vld [vmem:[%s1 + $0x860] sm:$0xff]
  %v317 = vld [vmem:[%s1 + $0x868] sm:$0xff]
  %v318 = vld [vmem:[%s1 + $0x870] sm:$0xff]
  %v319 = vld [vmem:[%s1 + $0x878] sm:$0xff]
  %v320 = vld [vmem:[%s1 + $0x880] sm:$0xff]
  %v321 = vld [vmem:[%s1 + $0x888] sm:$0xff]
  %v322 = vld [vmem:[%s1 + $0x890] sm:$0xff]
  %v323 = vld [vmem:[%s1 + $0x898] sm:$0xff]
  %v324 = vld [vmem:[%s1 + $0x8a0] sm:$0xff]
  %v325 = vld [vmem:[%s1 + $0x8a8] sm:$0xff]
  %v326 = vld [vmem:[%s1 + $0x8b0] sm:$0xff]
  %v327 = vld [vmem:[%s1 + $0x8b8] sm:$0xff]
  %v328 = vld [vmem:[%s1 + $0x8c0] sm:$0xff]
  %v329 = vld [vmem:[%s1 + $0x8c8] sm:$0xff]
  %v330 = vld [vmem:[%s1 + $0x8d0] sm:$0xff]
  %v331 = vld [vmem:[%s1 + $0x8d8] sm:$0xff]
  %v332 = vld [vmem:[%s1 + $0x8e0] sm:$0xff]
  %v333 = vld [vmem:[%s1 + $0x8e8] sm:$0xff]
  %v334 = vld [vmem:[%s1 + $0x8f0] sm:$0xff]
  %v335 = vld [vmem:[%s1 + $0x8f8] sm:$0xff]
  %v336 = vld [vmem:[%s1 + $0x900] sm:$0xff]
  %v337 = vld [vmem:[%s1 + $0x908] sm:$0xff]
  %v338 = vld [vmem:[%s1 + $0x910] sm:$0xff]
  %v339 = vld [vmem:[%s1 + $0x918] sm:$0xff]
  %v340 = vld [vmem:[%s1 + $0x920] sm:$0xff]
  %v341 = vld [vmem:[%s1 + $0x928] sm:$0xff]
  %v342 = vld [vmem:[%s1 + $0x930] sm:$0xff]
  %v343 = vld [vmem:[%s1 + $0x938] sm:$0xff]
  %v344 = vld [vmem:[%s1 + $0x940] sm:$0xff]
  %v345 = vld [vmem:[%s1 + $0x948] sm:$0xff]
  %v346 = vld [vmem:[%s1 + $0x950] sm:$0xff]
  %v347 = vld [vmem:[%s1 + $0x958] sm:$0xff]
  %v348 = vld [vmem:[%s1 + $0x960] sm:$0xff]
  %v349 = vld [vmem:[%s1 + $0x968] sm:$0xff]
  %v350 = vld [vmem:[%s1 + $0x970] sm:$0xff]
  %v351 = vld [vmem:[%s1 + $0x978] sm:$0xff]
  %v352 = vld [vmem:[%s1 + $0x980] sm:$0xff]
  %v353 = vld [vmem:[%s1 + $0x988] sm:$0xff]
  %v354 = vld [vmem:[%s1 + $0x990] sm:$0xff]
  %v355 = vld [vmem:[%s1 + $0x998] sm:$0xff]
  %v356 = vld [vmem:[%s1 + $0x9a0] sm:$0xff]
  %v357 = vld [vmem:[%s1 + $0x9a8] sm:$0xff]
  %v358 = vld [vmem:[%s1 + $0x9b0] sm:$0xff]
  %v359 = vld [vmem:[%s1 + $0x9b8] sm:$0xff]
  %v360 = vld [vmem:[%s1 + $0x9c0] sm:$0xff]
  %v361 = vld [vmem:[%s1 + $0x9c8] sm:$0xff]
  %v362 = vld [vmem:[%s1 + $0x9d0] sm:$0xff]
  %v363 = vld [vmem:[%s1 + $0x9d8] sm:$0xff]
  %v364 = vld [vmem:[%s1 + $0x9e0] sm:$0xff]
  %v365 = vld [vmem:[%s1 + $0x9e8] sm:$0xff]
  %v366 = vld [vmem:[%s1 + $0x9f0] sm:$0xff]
  %v367 = vld [vmem:[%s1 + $0x9f8] sm:$0xff]
  %v368 = vld [vmem:[%s1 + $0xa00] sm:$0xff]
  %v369 = vld [vmem:[%s1 + $0xa08] sm:$0xff]
  %v370 = vld [vmem:[%s1 + $0xa10] sm:$0xff]
  %v371 = vld [vmem:[%s1 + $0xa18] sm:$0xff]
  %v372 = vld [vmem:[%s1 + $0xa20] sm:$0xff]
  %v373 = vld [vmem:[%s1 + $0xa28] sm:$0xff]
  %v374 = vld [vmem:[%s1 + $0xa30] sm:$0xff]
  %v375 = vld [vmem:[%s1 + $0xa38] sm:$0xff]
  %v376 = vld [vmem:[%s1 + $0xa40] sm:$0xff]
  %v377 = vld [vmem:[%s1 + $0xa48] sm:$0xff]
  %v378 = vld [vmem:[%s1 + $0xa50] sm:$0xff]
  %v379 = vld [vmem:[%s1 + $0xa58] sm:$0xff]
  %v380 = vld [vmem:[%s1 + $0xa60] sm:$0xff]
  %v381 = vld [vmem:[%s1 + $0xa68] sm:$0xff]
  %v382 = vld [vmem:[%s1 + $0xa70] sm:$0xff]
  %v383 = vld [vmem:[%s1 + $0xa78] sm:$0xff]
  %v384 = vld [vmem:[%s1 + $0xa80] sm:$0xff]
  %v385 = vld [vmem:[%s1 + $0xa88] sm:$0xff]
  %v386 = vld [vmem:[%s1 + $0xa90] sm:$0xff]
  %v387 = vld [vmem:[%s1 + $0xa98] sm:$0xff]
  %v388 = vld [vmem:[%s1 + $0xaa0] sm:$0xff]
  %v389 = vld [vmem:[%s1 + $0xaa8] sm:$0xff]
  %v390 = vld [vmem:[%s1 + $0xab0] sm:$0xff]
  %v391 = vld [vmem:[%s1 + $0xab8] sm:$0xff]
  %v392 = vld [vmem:[%s1 + $0xac0] sm:$0xff]
  %v393 = vld [vmem:[%s1 + $0xac8] sm:$0xff]
  %v394 = vld [vmem:[%s1 + $0xad0] sm:$0xff]
  %v395 = vld [vmem:[%s1 + $0xad8] sm:$0xff]
  %v396 = vld [vmem:[%s1 + $0xae0] sm:$0xff]
  %v397 = vld [vmem:[%s1 + $0xae8] sm:$0xff]
  %v398 = vld [vmem:[%s1 + $0xaf0] sm:$0xff]
  %v399 = vld [vmem:[%s1 + $0xaf8] sm:$0xff]
  %v400 = vld [vmem:[%s1 + $0xb00] sm:$0xff]
  %v401 = vld [vmem:[%s1 + $0xb08] sm:$0xff]
  %v402 = vld [vmem:[%s1 + $0xb10] sm:$0xff]
  %v403 = vld [vmem:[%s1 + $0xb18] sm:$0xff]
  %v404 = vld [vmem:[%s1 + $0xb20] sm:$0xff]
  %v405 = vld [vmem:[%s1 + $0xb28] sm:$0xff]
  %v406 = vld [vmem:[%s1 + $0xb30] sm:$0xff]
  %v407 = vld [vmem:[%s1 + $0xb38] sm:$0xff]
  %v408 = vld [vmem:[%s1 + $0xb40] sm:$0xff]
  %v409 = vld [vmem:[%s1 + $0xb48] sm:$0xff]
  %v410 = vld [vmem:[%s1 + $0xb50] sm:$0xff]
  %v411 = vld [vmem:[%s1 + $0xb58] sm:$0xff]
  %v412 = vld [vmem:[%s1 + $0xb60] sm:$0xff]
  %v413 = vld [vmem:[%s1 + $0xb68] sm:$0xff]
  %v414 = vld [vmem:[%s1 + $0xb70] sm:$0xff]
  %v415 = vld [vmem:[%s1 + $0xb78] sm:$0xff]
  %v416 = vld [vmem:[%s1 + $0xb80] sm:$0xff]
  %v417 = vld [vmem:[%s1 + $0xb88] sm:$0xff]
  %v418 = vld [vmem:[%s1 + $0xb90] sm:$0xff]
  %v419 = vld [vmem:[%s1 + $0xb98] sm:$0xff]
  %v420 = vld [vmem:[%s1 + $0xba0] sm:$0xff]
  %v421 = vld [vmem:[%s1 + $0xba8] sm:$0xff]
  %v422 = vld [vmem:[%s1 + $0xbb0] sm:$0xff]
  %v423 = vld [vmem:[%s1 + $0xbb8] sm:$0xff]
  %v424 = vld [vmem:[%s1 + $0xbc0] sm:$0xff]
  %v425 = vld [vmem:[%s1 + $0xbc8] sm:$0xff]
  %v426 = vld [vmem:[%s1 + $0xbd0] sm:$0xff]
  %v427 = vld [vmem:[%s1 + $0xbd8] sm:$0xff]
  %v428 = vld [vmem:[%s1 + $0xbe0] sm:$0xff]
  %v429 = vld [vmem:[%s1 + $0xbe8] sm:$0xff]
  %v430 = vld [vmem:[%s1 + $0xbf0] sm:$0xff]
  %v431 = vld [vmem:[%s1 + $0xbf8] sm:$0xff]
  %v432 = vld [vmem:[%s1 + $0xc00] sm:$0xff]
  %v433 = vld [vmem:[%s1 + $0xc08] sm:$0xff]
  %v434 = vld [vmem:[%s1 + $0xc10] sm:$0xff]
  %v435 = vld [vmem:[%s1 + $0xc18] sm:$0xff]
  %v436 = vld [vmem:[%s1 + $0xc20] sm:$0xff]
  %v437 = vld [vmem:[%s1 + $0xc28] sm:$0xff]
  %v438 = vld [vmem:[%s1 + $0xc30] sm:$0xff]
  %v439 = vld [vmem:[%s1 + $0xc38] sm:$0xff]
  %v440 = vld [vmem:[%s1 + $0xc40] sm:$0xff]
  %v441 = vld [vmem:[%s1 + $0xc48] sm:$0xff]
  %v442 = vld [vmem:[%s1 + $0xc50] sm:$0xff]
  %v443 = vld [vmem:[%s1 + $0xc58] sm:$0xff]
  %v444 = vld [vmem:[%s1 + $0xc60] sm:$0xff]
  %v445 = vld [vmem:[%s1 + $0xc68] sm:$0xff]
  %v446 = vld [vmem:[%s1 + $0xc70] sm:$0xff]
  %v447 = vld [vmem:[%s1 + $0xc78] sm:$0xff]
  %v448 = vld [vmem:[%s2] sm:$0x1]
  %v450 = vlaneseq
  %v451 = vshrl.u32 %v450, 7
  %v452 = vsub.s32 0, %v451
  %v453 = vrot.slane %v448, %v452
  %455 = vmatprep.subr.mxu0 0.0
  %456 = vmatpush1.msra.mxu0 %v48
  %457 = vmatprep.subr.mxu0 0.0
  %458 = vmatpush1.msra.mxu0 %v49
  %459 = vmatprep.subr.mxu0 0.0
  %460 = vmatpush1.msra.mxu0 %v50
  %461 = vmatprep.subr.mxu0 0.0
  %462 = vmatpush1.msra.mxu0 %v51
  %463 = vmatprep.subr.mxu0 0.0
  %464 = vmatpush1.msra.mxu0 %v52
  %465 = vmatprep.subr.mxu0 0.0
  %466 = vmatpush1.msra.mxu0 %v53
  %467 = vmatprep.subr.mxu0 0.0
  %468 = vmatpush1.msra.mxu0 %v54
  %469 = vmatprep.subr.mxu0 0.0
  %470 = vmatpush1.msra.mxu0 %v55
  %471 = vmatprep.subr.mxu0 0.0
  %472 = vmatpush1.msra.mxu0 %v56
  %473 = vmatprep.subr.mxu0 0.0
  %474 = vmatpush1.msra.mxu0 %v57
  %475 = vmatprep.subr.mxu0 0.0
  %476 = vmatpush1.msra.mxu0 %v58
  %477 = vmatprep.subr.mxu0 0.0
  %478 = vmatpush1.msra.mxu0 %v59
  %479 = vmatprep.subr.mxu0 0.0
  %480 = vmatpush1.msra.mxu0 %v60
  %481 = vmatprep.subr.mxu0 0.0
  %482 = vmatpush1.msra.mxu0 %v61
  %483 = vmatprep.subr.mxu0 0.0
  %484 = vmatpush1.msra.mxu0 %v62
  %485 = vmatprep.subr.mxu0 0.0
  %486 = vmatpush1.msra.mxu0 %v63
  %487 = vmatprep.subr.mxu0 0.0
  %488 = vmatpush1.msra.mxu0 %v64
  %489 = vmatprep.subr.mxu0 0.0
  %490 = vmatpush1.msra.mxu0 %v65
  %491 = vmatprep.subr.mxu0 0.0
  %492 = vmatpush1.msra.mxu0 %v66
  %493 = vmatprep.subr.mxu0 0.0
  %494 = vmatpush1.msra.mxu0 %v67
  %495 = vmatprep.subr.mxu0 0.0
  %496 = vmatpush1.msra.mxu0 %v68
  %497 = vmatprep.subr.mxu0 0.0
  %498 = vmatpush1.msra.mxu0 %v69
  %499 = vmatprep.subr.mxu0 0.0
  %500 = vmatpush1.msra.mxu0 %v70
  %501 = vmatprep.subr.mxu0 0.0
  %502 = vmatpush1.msra.mxu0 %v71
  %503 = vmatprep.subr.mxu0 0.0
  %504 = vmatpush1.msra.mxu0 %v72
  %505 = vmatprep.subr.mxu0 0.0
  %506 = vmatpush1.msra.mxu0 %v73
  %507 = vmatprep.subr.mxu0 0.0
  %508 = vmatpush1.msra.mxu0 %v74
  %509 = vmatprep.subr.mxu0 0.0
  %510 = vmatpush1.msra.mxu0 %v75
  %511 = vmatprep.subr.mxu0 0.0
  %512 = vmatpush1.msra.mxu0 %v76
  %513 = vmatprep.subr.mxu0 0.0
  %514 = vmatpush1.msra.mxu0 %v77
  %515 = vmatprep.subr.mxu0 0.0
  %516 = vmatpush1.msra.mxu0 %v78
  %517 = vmatprep.subr.mxu0 0.0
  %518 = vmatpush1.msra.mxu0 %v79
  %519 = vmatprep.mubr.f32.mxu0 %v24
  %520 = vmatmul.mubr.f32.gmra.mrb[0].mxu0 %v23
  %v521 = vpop.f32.mrb[0].mxu0
  %v522 = vadd.f32 %v453, %v521
  %v523 = vpop.f32.mrb[0].mxu0
  %524 = vdwg.mxu0
  %525 = vmatprep.subr.mxu0 0.0
  %526 = vmatpush1.msra.mxu0 %v80
  %527 = vmatprep.subr.mxu0 0.0
  %528 = vmatpush1.msra.mxu0 %v81
  %529 = vmatprep.subr.mxu0 0.0
  %530 = vmatpush1.msra.mxu0 %v82
  %531 = vmatprep.subr.mxu0 0.0
  %532 = vmatpush1.msra.mxu0 %v83
  %533 = vmatprep.subr.mxu0 0.0
  %534 = vmatpush1.msra.mxu0 %v84
  %535 = vmatprep.subr.mxu0 0.0
  %536 = vmatpush1.msra.mxu0 %v85
  %537 = vmatprep.subr.mxu0 0.0
  %538 = vmatpush1.msra.mxu0 %v86
  %539 = vmatprep.subr.mxu0 0.0
  %540 = vmatpush1.msra.mxu0 %v87
  %541 = vmatprep.subr.mxu0 0.0
  %542 = vmatpush1.msra.mxu0 %v88
  %543 = vmatprep.subr.mxu0 0.0
  %544 = vmatpush1.msra.mxu0 %v89
  %545 = vmatprep.subr.mxu0 0.0
  %546 = vmatpush1.msra.mxu0 %v90
  %547 = vmatprep.subr.mxu0 0.0
  %548 = vmatpush1.msra.mxu0 %v91
  %549 = vmatprep.subr.mxu0 0.0
  %550 = vmatpush1.msra.mxu0 %v92
  %551 = vmatprep.subr.mxu0 0.0
  %552 = vmatpush1.msra.mxu0 %v93
  %553 = vmatprep.subr.mxu0 0.0
  %554 = vmatpush1.msra.mxu0 %v94
  %555 = vmatprep.subr.mxu0 0.0
  %556 = vmatpush1.msra.mxu0 %v95
  %557 = vmatprep.subr.mxu0 0.0
  %558 = vmatpush1.msra.mxu0 %v96
  %559 = vmatprep.subr.mxu0 0.0
  %560 = vmatpush1.msra.mxu0 %v97
  %561 = vmatprep.subr.mxu0 0.0
  %562 = vmatpush1.msra.mxu0 %v98
  %563 = vmatprep.subr.mxu0 0.0
  %564 = vmatpush1.msra.mxu0 %v99
  %565 = vmatprep.subr.mxu0 0.0
  %566 = vmatpush1.msra.mxu0 %v100
  %567 = vmatprep.subr.mxu0 0.0
  %568 = vmatpush1.msra.mxu0 %v101
  %569 = vmatprep.subr.mxu0 0.0
  %570 = vmatpush1.msra.mxu0 %v102
  %571 = vmatprep.subr.mxu0 0.0
  %572 = vmatpush1.msra.mxu0 %v103
  %573 = vmatprep.subr.mxu0 0.0
  %574 = vmatpush1.msra.mxu0 %v104
  %575 = vmatprep.subr.mxu0 0.0
  %576 = vmatpush1.msra.mxu0 %v105
  %577 = vmatprep.subr.mxu0 0.0
  %578 = vmatpush1.msra.mxu0 %v106
  %579 = vmatprep.subr.mxu0 0.0
  %580 = vmatpush1.msra.mxu0 %v107
  %581 = vmatprep.subr.mxu0 0.0
  %582 = vmatpush1.msra.mxu0 %v108
  %583 = vmatprep.subr.mxu0 0.0
  %584 = vmatpush1.msra.mxu0 %v109
  %585 = vmatprep.subr.mxu0 0.0
  %586 = vmatpush1.msra.mxu0 %v110
  %587 = vmatprep.subr.mxu0 0.0
  %588 = vmatpush1.msra.mxu0 %v111
  %589 = vmatprep.mubr.f32.mxu0 %v26
  %590 = vmatmul.mubr.f32.gmra.mrb[0].mxu0 %v25
  %v591 = vpop.f32.mrb[0].mxu0
  %v592 = vadd.f32 %v522, %v591
  %v593 = vpop.f32.mrb[0].mxu0
  %594 = vdwg.mxu0
  %595 = vmatprep.subr.mxu0 0.0
  %596 = vmatpush1.msra.mxu0 %v112
  %597 = vmatprep.subr.mxu0 0.0
  %598 = vmatpush1.msra.mxu0 %v113
  %599 = vmatprep.subr.mxu0 0.0
  %600 = vmatpush1.msra.mxu0 %v114
  %601 = vmatprep.subr.mxu0 0.0
  %602 = vmatpush1.msra.mxu0 %v115
  %603 = vmatprep.subr.mxu0 0.0
  %604 = vmatpush1.msra.mxu0 %v116
  %605 = vmatprep.subr.mxu0 0.0
  %606 = vmatpush1.msra.mxu0 %v117
  %607 = vmatprep.subr.mxu0 0.0
  %608 = vmatpush1.msra.mxu0 %v118
  %609 = vmatprep.subr.mxu0 0.0
  %610 = vmatpush1.msra.mxu0 %v119
  %611 = vmatprep.subr.mxu0 0.0
  %612 = vmatpush1.msra.mxu0 %v120
  %613 = vmatprep.subr.mxu0 0.0
  %614 = vmatpush1.msra.mxu0 %v121
  %615 = vmatprep.subr.mxu0 0.0
  %616 = vmatpush1.msra.mxu0 %v122
  %617 = vmatprep.subr.mxu0 0.0
  %618 = vmatpush1.msra.mxu0 %v123
  %619 = vmatprep.subr.mxu0 0.0
  %620 = vmatpush1.msra.mxu0 %v124
  %621 = vmatprep.subr.mxu0 0.0
  %622 = vmatpush1.msra.mxu0 %v125
  %623 = vmatprep.subr.mxu0 0.0
  %624 = vmatpush1.msra.mxu0 %v126
  %625 = vmatprep.subr.mxu0 0.0
  %626 = vmatpush1.msra.mxu0 %v127
  %627 = vmatprep.subr.mxu0 0.0
  %628 = vmatpush1.msra.mxu0 %v128
  %629 = vmatprep.subr.mxu0 0.0
  %630 = vmatpush1.msra.mxu0 %v129
  %631 = vmatprep.subr.mxu0 0.0
  %632 = vmatpush1.msra.mxu0 %v130
  %633 = vmatprep.subr.mxu0 0.0
  %634 = vmatpush1.msra.mxu0 %v131
  %635 = vmatprep.subr.mxu0 0.0
  %636 = vmatpush1.msra.mxu0 %v132
  %637 = vmatprep.subr.mxu0 0.0
  %638 = vmatpush1.msra.mxu0 %v133
  %639 = vmatprep.subr.mxu0 0.0
  %640 = vmatpush1.msra.mxu0 %v134
  %641 = vmatprep.subr.mxu0 0.0
  %642 = vmatpush1.msra.mxu0 %v135
  %643 = vmatprep.subr.mxu0 0.0
  %644 = vmatpush1.msra.mxu0 %v136
  %645 = vmatprep.subr.mxu0 0.0
  %646 = vmatpush1.msra.mxu0 %v137
  %647 = vmatprep.subr.mxu0 0.0
  %648 = vmatpush1.msra.mxu0 %v138
  %649 = vmatprep.subr.mxu0 0.0
  %650 = vmatpush1.msra.mxu0 %v139
  %651 = vmatprep.subr.mxu0 0.0
  %652 = vmatpush1.msra.mxu0 %v140
  %653 = vmatprep.subr.mxu0 0.0
  %654 = vmatpush1.msra.mxu0 %v141
  %655 = vmatprep.subr.mxu0 0.0
  %656 = vmatpush1.msra.mxu0 %v142
  %657 = vmatprep.subr.mxu0 0.0
  %658 = vmatpush1.msra.mxu0 %v143
  %659 = vmatprep.mubr.f32.mxu0 %v28
  %660 = vmatmul.mubr.f32.gmra.mrb[0].mxu0 %v27
  %v661 = vpop.f32.mrb[0].mxu0
  %v662 = vadd.f32 %v592, %v661
  %v663 = vpop.f32.mrb[0].mxu0
  %664 = vdwg.mxu0
  %665 = vmatprep.subr.mxu0 0.0
  %666 = vmatpush1.msra.mxu0 %v144
  %667 = vmatprep.subr.mxu0 0.0
  %668 = vmatpush1.msra.mxu0 %v145
  %669 = vmatprep.subr.mxu0 0.0
  %670 = vmatpush1.msra.mxu0 %v146
  %671 = vmatprep.subr.mxu0 0.0
  %672 = vmatpush1.msra.mxu0 %v147
  %673 = vmatprep.subr.mxu0 0.0
  %674 = vmatpush1.msra.mxu0 %v148
  %675 = vmatprep.subr.mxu0 0.0
  %676 = vmatpush1.msra.mxu0 %v149
  %677 = vmatprep.subr.mxu0 0.0
  %678 = vmatpush1.msra.mxu0 %v150
  %679 = vmatprep.subr.mxu0 0.0
  %680 = vmatpush1.msra.mxu0 %v151
  %681 = vmatprep.subr.mxu0 0.0
  %682 = vmatpush1.msra.mxu0 %v152
  %683 = vmatprep.subr.mxu0 0.0
  %684 = vmatpush1.msra.mxu0 %v153
  %685 = vmatprep.subr.mxu0 0.0
  %686 = vmatpush1.msra.mxu0 %v154
  %687 = vmatprep.subr.mxu0 0.0
  %688 = vmatpush1.msra.mxu0 %v155
  %689 = vmatprep.subr.mxu0 0.0
  %690 = vmatpush1.msra.mxu0 %v156
  %691 = vmatprep.subr.mxu0 0.0
  %692 = vmatpush1.msra.mxu0 %v157
  %693 = vmatprep.subr.mxu0 0.0
  %694 = vmatpush1.msra.mxu0 %v158
  %695 = vmatprep.subr.mxu0 0.0
  %696 = vmatpush1.msra.mxu0 %v159
  %697 = vmatprep.subr.mxu0 0.0
  %698 = vmatpush1.msra.mxu0 %v160
  %699 = vmatprep.subr.mxu0 0.0
  %700 = vmatpush1.msra.mxu0 %v161
  %701 = vmatprep.subr.mxu0 0.0
  %702 = vmatpush1.msra.mxu0 %v162
  %703 = vmatprep.subr.mxu0 0.0
  %704 = vmatpush1.msra.mxu0 %v163
  %705 = vmatprep.subr.mxu0 0.0
  %706 = vmatpush1.msra.mxu0 %v164
  %707 = vmatprep.subr.mxu0 0.0
  %708 = vmatpush1.msra.mxu0 %v165
  %709 = vmatprep.subr.mxu0 0.0
  %710 = vmatpush1.msra.mxu0 %v166
  %711 = vmatprep.subr.mxu0 0.0
  %712 = vmatpush1.msra.mxu0 %v167
  %713 = vmatprep.subr.mxu0 0.0
  %714 = vmatpush1.msra.mxu0 %v168
  %715 = vmatprep.subr.mxu0 0.0
  %716 = vmatpush1.msra.mxu0 %v169
  %717 = vmatprep.subr.mxu0 0.0
  %718 = vmatpush1.msra.mxu0 %v170
  %719 = vmatprep.subr.mxu0 0.0
  %720 = vmatpush1.msra.mxu0 %v171
  %721 = vmatprep.subr.mxu0 0.0
  %722 = vmatpush1.msra.mxu0 %v172
  %723 = vmatprep.subr.mxu0 0.0
  %724 = vmatpush1.msra.mxu0 %v173
  %725 = vmatprep.subr.mxu0 0.0
  %726 = vmatpush1.msra.mxu0 %v174
  %727 = vmatprep.subr.mxu0 0.0
  %728 = vmatpush1.msra.mxu0 %v175
  %729 = vmatprep.mubr.f32.mxu0 %v30
  %730 = vmatmul.mubr.f32.gmra.mrb[0].mxu0 %v29
  %v731 = vpop.f32.mrb[0].mxu0
  %v732 = vadd.f32 %v662, %v731
  %v733 = vpop.f32.mrb[0].mxu0
  %734 = vdwg.mxu0
  %735 = vmatprep.subr.mxu0 0.0
  %736 = vmatpush1.msra.mxu0 %v176
  %737 = vmatprep.subr.mxu0 0.0
  %738 = vmatpush1.msra.mxu0 %v177
  %739 = vmatprep.subr.mxu0 0.0
  %740 = vmatpush1.msra.mxu0 %v178
  %741 = vmatprep.subr.mxu0 0.0
  %742 = vmatpush1.msra.mxu0 %v179
  %743 = vmatprep.subr.mxu0 0.0
  %744 = vmatpush1.msra.mxu0 %v180
  %745 = vmatprep.subr.mxu0 0.0
  %746 = vmatpush1.msra.mxu0 %v181
  %747 = vmatprep.subr.mxu0 0.0
  %748 = vmatpush1.msra.mxu0 %v182
  %749 = vmatprep.subr.mxu0 0.0
  %750 = vmatpush1.msra.mxu0 %v183
  %751 = vmatprep.subr.mxu0 0.0
  %752 = vmatpush1.msra.mxu0 %v184
  %753 = vmatprep.subr.mxu0 0.0
  %754 = vmatpush1.msra.mxu0 %v185
  %755 = vmatprep.subr.mxu0 0.0
  %756 = vmatpush1.msra.mxu0 %v186
  %757 = vmatprep.subr.mxu0 0.0
  %758 = vmatpush1.msra.mxu0 %v187
  %759 = vmatprep.subr.mxu0 0.0
  %760 = vmatpush1.msra.mxu0 %v188
  %761 = vmatprep.subr.mxu0 0.0
  %762 = vmatpush1.msra.mxu0 %v189
  %763 = vmatprep.subr.mxu0 0.0
  %764 = vmatpush1.msra.mxu0 %v190
  %765 = vmatprep.subr.mxu0 0.0
  %766 = vmatpush1.msra.mxu0 %v191
  %767 = vmatprep.subr.mxu0 0.0
  %768 = vmatpush1.msra.mxu0 %v192
  %769 = vmatprep.subr.mxu0 0.0
  %770 = vmatpush1.msra.mxu0 %v193
  %771 = vmatprep.subr.mxu0 0.0
  %772 = vmatpush1.msra.mxu0 %v194
  %773 = vmatprep.subr.mxu0 0.0
  %774 = vmatpush1.msra.mxu0 %v195
  %775 = vmatprep.subr.mxu0 0.0
  %776 = vmatpush1.msra.mxu0 %v196
  %777 = vmatprep.subr.mxu0 0.0
  %778 = vmatpush1.msra.mxu0 %v197
  %779 = vmatprep.subr.mxu0 0.0
  %780 = vmatpush1.msra.mxu0 %v198
  %781 = vmatprep.subr.mxu0 0.0
  %782 = vmatpush1.msra.mxu0 %v199
  %783 = vmatprep.subr.mxu0 0.0
  %784 = vmatpush1.msra.mxu0 %v200
  %785 = vmatprep.subr.mxu0 0.0
  %786 = vmatpush1.msra.mxu0 %v201
  %787 = vmatprep.subr.mxu0 0.0
  %788 = vmatpush1.msra.mxu0 %v202
  %789 = vmatprep.subr.mxu0 0.0
  %790 = vmatpush1.msra.mxu0 %v203
  %791 = vmatprep.subr.mxu0 0.0
  %792 = vmatpush1.msra.mxu0 %v204
  %793 = vmatprep.subr.mxu0 0.0
  %794 = vmatpush1.msra.mxu0 %v205
  %795 = vmatprep.subr.mxu0 0.0
  %796 = vmatpush1.msra.mxu0 %v206
  %797 = vmatprep.subr.mxu0 0.0
  %798 = vmatpush1.msra.mxu0 %v207
  %799 = vmatprep.mubr.f32.mxu0 %v32
  %800 = vmatmul.mubr.f32.gmra.mrb[0].mxu0 %v31
  %v801 = vpop.f32.mrb[0].mxu0
  %v802 = vadd.f32 %v732, %v801
  %v803 = vpop.f32.mrb[0].mxu0
  %804 = vdwg.mxu0
  %805 = vmatprep.subr.mxu0 0.0
  %806 = vmatpush1.msra.mxu0 %v208
  %807 = vmatprep.subr.mxu0 0.0
  %808 = vmatpush1.msra.mxu0 %v209
  %809 = vmatprep.subr.mxu0 0.0
  %810 = vmatpush1.msra.mxu0 %v210
  %811 = vmatprep.subr.mxu0 0.0
  %812 = vmatpush1.msra.mxu0 %v211
  %813 = vmatprep.subr.mxu0 0.0
  %814 = vmatpush1.msra.mxu0 %v212
  %815 = vmatprep.subr.mxu0 0.0
  %816 = vmatpush1.msra.mxu0 %v213
  %817 = vmatprep.subr.mxu0 0.0
  %818 = vmatpush1.msra.mxu0 %v214
  %819 = vmatprep.subr.mxu0 0.0
  %820 = vmatpush1.msra.mxu0 %v215
  %821 = vmatprep.subr.mxu0 0.0
  %822 = vmatpush1.msra.mxu0 %v216
  %823 = vmatprep.subr.mxu0 0.0
  %824 = vmatpush1.msra.mxu0 %v217
  %825 = vmatprep.subr.mxu0 0.0
  %826 = vmatpush1.msra.mxu0 %v218
  %827 = vmatprep.subr.mxu0 0.0
  %828 = vmatpush1.msra.mxu0 %v219
  %829 = vmatprep.subr.mxu0 0.0
  %830 = vmatpush1.msra.mxu0 %v220
  %831 = vmatprep.subr.mxu0 0.0
  %832 = vmatpush1.msra.mxu0 %v221
  %833 = vmatprep.subr.mxu0 0.0
  %834 = vmatpush1.msra.mxu0 %v222
  %835 = vmatprep.subr.mxu0 0.0
  %836 = vmatpush1.msra.mxu0 %v223
  %837 = vmatprep.subr.mxu0 0.0
  %838 = vmatpush1.msra.mxu0 %v224
  %839 = vmatprep.subr.mxu0 0.0
  %840 = vmatpush1.msra.mxu0 %v225
  %841 = vmatprep.subr.mxu0 0.0
  %842 = vmatpush1.msra.mxu0 %v226
  %843 = vmatprep.subr.mxu0 0.0
  %844 = vmatpush1.msra.mxu0 %v227
  %845 = vmatprep.subr.mxu0 0.0
  %846 = vmatpush1.msra.mxu0 %v228
  %847 = vmatprep.subr.mxu0 0.0
  %848 = vmatpush1.msra.mxu0 %v229
  %849 = vmatprep.subr.mxu0 0.0
  %850 = vmatpush1.msra.mxu0 %v230
  %851 = vmatprep.subr.mxu0 0.0
  %852 = vmatpush1.msra.mxu0 %v231
  %853 = vmatprep.subr.mxu0 0.0
  %854 = vmatpush1.msra.mxu0 %v232
  %855 = vmatprep.subr.mxu0 0.0
  %856 = vmatpush1.msra.mxu0 %v233
  %857 = vmatprep.subr.mxu0 0.0
  %858 = vmatpush1.msra.mxu0 %v234
  %859 = vmatprep.subr.mxu0 0.0
  %860 = vmatpush1.msra.mxu0 %v235
  %861 = vmatprep.subr.mxu0 0.0
  %862 = vmatpush1.msra.mxu0 %v236
  %863 = vmatprep.subr.mxu0 0.0
  %864 = vmatpush1.msra.mxu0 %v237
  %865 = vmatprep.subr.mxu0 0.0
  %866 = vmatpush1.msra.mxu0 %v238
  %867 = vmatprep.subr.mxu0 0.0
  %868 = vmatpush1.msra.mxu0 %v239
  %869 = vmatprep.mubr.f32.mxu0 %v34
  %870 = vmatmul.mubr.f32.gmra.mrb[0].mxu0 %v33
  %v871 = vpop.f32.mrb[0].mxu0
  %v872 = vadd.f32 %v802, %v871
  %v873 = vpop.f32.mrb[0].mxu0
  %874 = vdwg.mxu0
  %875 = vmatprep.subr.mxu0 0.0
  %876 = vmatpush1.msra.mxu0 %v240
  %877 = vmatprep.subr.mxu0 0.0
  %878 = vmatpush1.msra.mxu0 %v241
  %879 = vmatprep.subr.mxu0 0.0
  %880 = vmatpush1.msra.mxu0 %v242
  %881 = vmatprep.subr.mxu0 0.0
  %882 = vmatpush1.msra.mxu0 %v243
  %883 = vmatprep.subr.mxu0 0.0
  %884 = vmatpush1.msra.mxu0 %v244
  %885 = vmatprep.subr.mxu0 0.0
  %886 = vmatpush1.msra.mxu0 %v245
  %887 = vmatprep.subr.mxu0 0.0
  %888 = vmatpush1.msra.mxu0 %v246
  %889 = vmatprep.subr.mxu0 0.0
  %890 = vmatpush1.msra.mxu0 %v247
  %891 = vmatprep.subr.mxu0 0.0
  %892 = vmatpush1.msra.mxu0 %v248
  %893 = vmatprep.subr.mxu0 0.0
  %894 = vmatpush1.msra.mxu0 %v249
  %895 = vmatprep.subr.mxu0 0.0
  %896 = vmatpush1.msra.mxu0 %v250
  %897 = vmatprep.subr.mxu0 0.0
  %898 = vmatpush1.msra.mxu0 %v251
  %899 = vmatprep.subr.mxu0 0.0
  %900 = vmatpush1.msra.mxu0 %v252
  %901 = vmatprep.subr.mxu0 0.0
  %902 = vmatpush1.msra.mxu0 %v253
  %903 = vmatprep.subr.mxu0 0.0
  %904 = vmatpush1.msra.mxu0 %v254
  %905 = vmatprep.subr.mxu0 0.0
  %906 = vmatpush1.msra.mxu0 %v255
  %907 = vmatprep.subr.mxu0 0.0
  %908 = vmatpush1.msra.mxu0 %v256
  %909 = vmatprep.subr.mxu0 0.0
  %910 = vmatpush1.msra.mxu0 %v257
  %911 = vmatprep.subr.mxu0 0.0
  %912 = vmatpush1.msra.mxu0 %v258
  %913 = vmatprep.subr.mxu0 0.0
  %914 = vmatpush1.msra.mxu0 %v259
  %915 = vmatprep.subr.mxu0 0.0
  %916 = vmatpush1.msra.mxu0 %v260
  %917 = vmatprep.subr.mxu0 0.0
  %918 = vmatpush1.msra.mxu0 %v261
  %919 = vmatprep.subr.mxu0 0.0
  %920 = vmatpush1.msra.mxu0 %v262
  %921 = vmatprep.subr.mxu0 0.0
  %922 = vmatpush1.msra.mxu0 %v263
  %923 = vmatprep.subr.mxu0 0.0
  %924 = vmatpush1.msra.mxu0 %v264
  %925 = vmatprep.subr.mxu0 0.0
  %926 = vmatpush1.msra.mxu0 %v265
  %927 = vmatprep.subr.mxu0 0.0
  %928 = vmatpush1.msra.mxu0 %v266
  %929 = vmatprep.subr.mxu0 0.0
  %930 = vmatpush1.msra.mxu0 %v267
  %931 = vmatprep.subr.mxu0 0.0
  %932 = vmatpush1.msra.mxu0 %v268
  %933 = vmatprep.subr.mxu0 0.0
  %934 = vmatpush1.msra.mxu0 %v269
  %935 = vmatprep.subr.mxu0 0.0
  %936 = vmatpush1.msra.mxu0 %v270
  %937 = vmatprep.subr.mxu0 0.0
  %938 = vmatpush1.msra.mxu0 %v271
  %939 = vmatprep.mubr.f32.mxu0 %v36
  %940 = vmatmul.mubr.f32.gmra.mrb[0].mxu0 %v35
  %v941 = vpop.f32.mrb[0].mxu0
  %v942 = vadd.f32 %v872, %v941
  %v943 = vpop.f32.mrb[0].mxu0
  %944 = vdwg.mxu0
  %945 = vmatprep.subr.mxu0 0.0
  %946 = vmatpush1.msra.mxu0 %v272
  %947 = vmatprep.subr.mxu0 0.0
  %948 = vmatpush1.msra.mxu0 %v273
  %949 = vmatprep.subr.mxu0 0.0
  %950 = vmatpush1.msra.mxu0 %v274
  %951 = vmatprep.subr.mxu0 0.0
  %952 = vmatpush1.msra.mxu0 %v275
  %953 = vmatprep.subr.mxu0 0.0
  %954 = vmatpush1.msra.mxu0 %v276
  %955 = vmatprep.subr.mxu0 0.0
  %956 = vmatpush1.msra.mxu0 %v277
  %957 = vmatprep.subr.mxu0 0.0
  %958 = vmatpush1.msra.mxu0 %v278
  %959 = vmatprep.subr.mxu0 0.0
  %960 = vmatpush1.msra.mxu0 %v279
  %961 = vmatprep.subr.mxu0 0.0
  %962 = vmatpush1.msra.mxu0 %v280
  %963 = vmatprep.subr.mxu0 0.0
  %964 = vmatpush1.msra.mxu0 %v281
  %965 = vmatprep.subr.mxu0 0.0
  %966 = vmatpush1.msra.mxu0 %v282
  %967 = vmatprep.subr.mxu0 0.0
  %968 = vmatpush1.msra.mxu0 %v283
  %969 = vmatprep.subr.mxu0 0.0
  %970 = vmatpush1.msra.mxu0 %v284
  %971 = vmatprep.subr.mxu0 0.0
  %972 = vmatpush1.msra.mxu0 %v285
  %973 = vmatprep.subr.mxu0 0.0
  %974 = vmatpush1.msra.mxu0 %v286
  %975 = vmatprep.subr.mxu0 0.0
  %976 = vmatpush1.msra.mxu0 %v287
  %977 = vmatprep.subr.mxu0 0.0
  %978 = vmatpush1.msra.mxu0 %v288
  %979 = vmatprep.subr.mxu0 0.0
  %980 = vmatpush1.msra.mxu0 %v289
  %981 = vmatprep.subr.mxu0 0.0
  %982 = vmatpush1.msra.mxu0 %v290
  %983 = vmatprep.subr.mxu0 0.0
  %984 = vmatpush1.msra.mxu0 %v291
  %985 = vmatprep.subr.mxu0 0.0
  %986 = vmatpush1.msra.mxu0 %v292
  %987 = vmatprep.subr.mxu0 0.0
  %988 = vmatpush1.msra.mxu0 %v293
  %989 = vmatprep.subr.mxu0 0.0
  %990 = vmatpush1.msra.mxu0 %v294
  %991 = vmatprep.subr.mxu0 0.0
  %992 = vmatpush1.msra.mxu0 %v295
  %993 = vmatprep.subr.mxu0 0.0
  %994 = vmatpush1.msra.mxu0 %v296
  %995 = vmatprep.subr.mxu0 0.0
  %996 = vmatpush1.msra.mxu0 %v297
  %997 = vmatprep.subr.mxu0 0.0
  %998 = vmatpush1.msra.mxu0 %v298
  %999 = vmatprep.subr.mxu0 0.0
  %1000 = vmatpush1.msra.mxu0 %v299
  %1001 = vmatprep.subr.mxu0 0.0
  %1002 = vmatpush1.msra.mxu0 %v300
  %1003 = vmatprep.subr.mxu0 0.0
  %1004 = vmatpush1.msra.mxu0 %v301
  %1005 = vmatprep.subr.mxu0 0.0
  %1006 = vmatpush1.msra.mxu0 %v302
  %1007 = vmatprep.subr.mxu0 0.0
  %1008 = vmatpush1.msra.mxu0 %v303
  %1009 = vmatprep.mubr.f32.mxu0 %v38
  %1010 = vmatmul.mubr.f32.gmra.mrb[0].mxu0 %v37
  %v1011 = vpop.f32.mrb[0].mxu0
  %v1012 = vadd.f32 %v942, %v1011
  %v1013 = vpop.f32.mrb[0].mxu0
  %1014 = vdwg.mxu0
  %1015 = vmatprep.subr.mxu0 0.0
  %1016 = vmatpush1.msra.mxu0 %v304
  %1017 = vmatprep.subr.mxu0 0.0
  %1018 = vmatpush1.msra.mxu0 %v305
  %1019 = vmatprep.subr.mxu0 0.0
  %1020 = vmatpush1.msra.mxu0 %v306
  %1021 = vmatprep.subr.mxu0 0.0
  %1022 = vmatpush1.msra.mxu0 %v307
  %1023 = vmatprep.subr.mxu0 0.0
  %1024 = vmatpush1.msra.mxu0 %v308
  %1025 = vmatprep.subr.mxu0 0.0
  %1026 = vmatpush1.msra.mxu0 %v309
  %1027 = vmatprep.subr.mxu0 0.0
  %1028 = vmatpush1.msra.mxu0 %v310
  %1029 = vmatprep.subr.mxu0 0.0
  %1030 = vmatpush1.msra.mxu0 %v311
  %1031 = vmatprep.subr.mxu0 0.0
  %1032 = vmatpush1.msra.mxu0 %v312
  %1033 = vmatprep.subr.mxu0 0.0
  %1034 = vmatpush1.msra.mxu0 %v313
  %1035 = vmatprep.subr.mxu0 0.0
  %1036 = vmatpush1.msra.mxu0 %v314
  %1037 = vmatprep.subr.mxu0 0.0
  %1038 = vmatpush1.msra.mxu0 %v315
  %1039 = vmatprep.subr.mxu0 0.0
  %1040 = vmatpush1.msra.mxu0 %v316
  %1041 = vmatprep.subr.mxu0 0.0
  %1042 = vmatpush1.msra.mxu0 %v317
  %1043 = vmatprep.subr.mxu0 0.0
  %1044 = vmatpush1.msra.mxu0 %v318
  %1045 = vmatprep.subr.mxu0 0.0
  %1046 = vmatpush1.msra.mxu0 %v319
  %1047 = vmatprep.subr.mxu0 0.0
  %1048 = vmatpush1.msra.mxu0 %v320
  %1049 = vmatprep.subr.mxu0 0.0
  %1050 = vmatpush1.msra.mxu0 %v321
  %1051 = vmatprep.subr.mxu0 0.0
  %1052 = vmatpush1.msra.mxu0 %v322
  %1053 = vmatprep.subr.mxu0 0.0
  %1054 = vmatpush1.msra.mxu0 %v323
  %1055 = vmatprep.subr.mxu0 0.0
  %1056 = vmatpush1.msra.mxu0 %v324
  %1057 = vmatprep.subr.mxu0 0.0
  %1058 = vmatpush1.msra.mxu0 %v325
  %1059 = vmatprep.subr.mxu0 0.0
  %1060 = vmatpush1.msra.mxu0 %v326
  %1061 = vmatprep.subr.mxu0 0.0
  %1062 = vmatpush1.msra.mxu0 %v327
  %1063 = vmatprep.subr.mxu0 0.0
  %1064 = vmatpush1.msra.mxu0 %v328
  %1065 = vmatprep.subr.mxu0 0.0
  %1066 = vmatpush1.msra.mxu0 %v329
  %1067 = vmatprep.subr.mxu0 0.0
  %1068 = vmatpush1.msra.mxu0 %v330
  %1069 = vmatprep.subr.mxu0 0.0
  %1070 = vmatpush1.msra.mxu0 %v331
  %1071 = vmatprep.subr.mxu0 0.0
  %1072 = vmatpush1.msra.mxu0 %v332
  %1073 = vmatprep.subr.mxu0 0.0
  %1074 = vmatpush1.msra.mxu0 %v333
  %1075 = vmatprep.subr.mxu0 0.0
  %1076 = vmatpush1.msra.mxu0 %v334
  %1077 = vmatprep.subr.mxu0 0.0
  %1078 = vmatpush1.msra.mxu0 %v335
  %1079 = vmatprep.mubr.f32.mxu0 %v40
  %1080 = vmatmul.mubr.f32.gmra.mrb[0].mxu0 %v39
  %v1081 = vpop.f32.mrb[0].mxu0
  %v1082 = vadd.f32 %v1012, %v1081
  %v1083 = vpop.f32.mrb[0].mxu0
  %1084 = vdwg.mxu0
  %1085 = vmatprep.subr.mxu0 0.0
  %1086 = vmatpush1.msra.mxu0 %v336
  %1087 = vmatprep.subr.mxu0 0.0
  %1088 = vmatpush1.msra.mxu0 %v337
  %1089 = vmatprep.subr.mxu0 0.0
  %1090 = vmatpush1.msra.mxu0 %v338
  %1091 = vmatprep.subr.mxu0 0.0
  %1092 = vmatpush1.msra.mxu0 %v339
  %1093 = vmatprep.subr.mxu0 0.0
  %1094 = vmatpush1.msra.mxu0 %v340
  %1095 = vmatprep.subr.mxu0 0.0
  %1096 = vmatpush1.msra.mxu0 %v341
  %1097 = vmatprep.subr.mxu0 0.0
  %1098 = vmatpush1.msra.mxu0 %v342
  %1099 = vmatprep.subr.mxu0 0.0
  %1100 = vmatpush1.msra.mxu0 %v343
  %1101 = vmatprep.subr.mxu0 0.0
  %1102 = vmatpush1.msra.mxu0 %v344
  %1103 = vmatprep.subr.mxu0 0.0
  %1104 = vmatpush1.msra.mxu0 %v345
  %1105 = vmatprep.subr.mxu0 0.0
  %1106 = vmatpush1.msra.mxu0 %v346
  %1107 = vmatprep.subr.mxu0 0.0
  %1108 = vmatpush1.msra.mxu0 %v347
  %1109 = vmatprep.subr.mxu0 0.0
  %1110 = vmatpush1.msra.mxu0 %v348
  %1111 = vmatprep.subr.mxu0 0.0
  %1112 = vmatpush1.msra.mxu0 %v349
  %1113 = vmatprep.subr.mxu0 0.0
  %1114 = vmatpush1.msra.mxu0 %v350
  %1115 = vmatprep.subr.mxu0 0.0
  %1116 = vmatpush1.msra.mxu0 %v351
  %1117 = vmatprep.subr.mxu0 0.0
  %1118 = vmatpush1.msra.mxu0 %v352
  %1119 = vmatprep.subr.mxu0 0.0
  %1120 = vmatpush1.msra.mxu0 %v353
  %1121 = vmatprep.subr.mxu0 0.0
  %1122 = vmatpush1.msra.mxu0 %v354
  %1123 = vmatprep.subr.mxu0 0.0
  %1124 = vmatpush1.msra.mxu0 %v355
  %1125 = vmatprep.subr.mxu0 0.0
  %1126 = vmatpush1.msra.mxu0 %v356
  %1127 = vmatprep.subr.mxu0 0.0
  %1128 = vmatpush1.msra.mxu0 %v357
  %1129 = vmatprep.subr.mxu0 0.0
  %1130 = vmatpush1.msra.mxu0 %v358
  %1131 = vmatprep.subr.mxu0 0.0
  %1132 = vmatpush1.msra.mxu0 %v359
  %1133 = vmatprep.subr.mxu0 0.0
  %1134 = vmatpush1.msra.mxu0 %v360
  %1135 = vmatprep.subr.mxu0 0.0
  %1136 = vmatpush1.msra.mxu0 %v361
  %1137 = vmatprep.subr.mxu0 0.0
  %1138 = vmatpush1.msra.mxu0 %v362
  %1139 = vmatprep.subr.mxu0 0.0
  %1140 = vmatpush1.msra.mxu0 %v363
  %1141 = vmatprep.subr.mxu0 0.0
  %1142 = vmatpush1.msra.mxu0 %v364
  %1143 = vmatprep.subr.mxu0 0.0
  %1144 = vmatpush1.msra.mxu0 %v365
  %1145 = vmatprep.subr.mxu0 0.0
  %1146 = vmatpush1.msra.mxu0 %v366
  %1147 = vmatprep.subr.mxu0 0.0
  %1148 = vmatpush1.msra.mxu0 %v367
  %1149 = vmatprep.mubr.f32.mxu0 %v42
  %1150 = vmatmul.mubr.f32.gmra.mrb[0].mxu0 %v41
  %v1151 = vpop.f32.mrb[0].mxu0
  %v1152 = vadd.f32 %v1082, %v1151
  %v1153 = vpop.f32.mrb[0].mxu0
  %1154 = vdwg.mxu0
  %1155 = vmatprep.subr.mxu0 0.0
  %1156 = vmatpush1.msra.mxu0 %v368
  %1157 = vmatprep.subr.mxu0 0.0
  %1158 = vmatpush1.msra.mxu0 %v369
  %1159 = vmatprep.subr.mxu0 0.0
  %1160 = vmatpush1.msra.mxu0 %v370
  %1161 = vmatprep.subr.mxu0 0.0
  %1162 = vmatpush1.msra.mxu0 %v371
  %1163 = vmatprep.subr.mxu0 0.0
  %1164 = vmatpush1.msra.mxu0 %v372
  %1165 = vmatprep.subr.mxu0 0.0
  %1166 = vmatpush1.msra.mxu0 %v373
  %1167 = vmatprep.subr.mxu0 0.0
  %1168 = vmatpush1.msra.mxu0 %v374
  %1169 = vmatprep.subr.mxu0 0.0
  %1170 = vmatpush1.msra.mxu0 %v375
  %1171 = vmatprep.subr.mxu0 0.0
  %1172 = vmatpush1.msra.mxu0 %v376
  %1173 = vmatprep.subr.mxu0 0.0
  %1174 = vmatpush1.msra.mxu0 %v377
  %1175 = vmatprep.subr.mxu0 0.0
  %1176 = vmatpush1.msra.mxu0 %v378
  %1177 = vmatprep.subr.mxu0 0.0
  %1178 = vmatpush1.msra.mxu0 %v379
  %1179 = vmatprep.subr.mxu0 0.0
  %1180 = vmatpush1.msra.mxu0 %v380
  %1181 = vmatprep.subr.mxu0 0.0
  %1182 = vmatpush1.msra.mxu0 %v381
  %1183 = vmatprep.subr.mxu0 0.0
  %1184 = vmatpush1.msra.mxu0 %v382
  %1185 = vmatprep.subr.mxu0 0.0
  %1186 = vmatpush1.msra.mxu0 %v383
  %1187 = vmatprep.subr.mxu0 0.0
  %1188 = vmatpush1.msra.mxu0 %v384
  %1189 = vmatprep.subr.mxu0 0.0
  %1190 = vmatpush1.msra.mxu0 %v385
  %1191 = vmatprep.subr.mxu0 0.0
  %1192 = vmatpush1.msra.mxu0 %v386
  %1193 = vmatprep.subr.mxu0 0.0
  %1194 = vmatpush1.msra.mxu0 %v387
  %1195 = vmatprep.subr.mxu0 0.0
  %1196 = vmatpush1.msra.mxu0 %v388
  %1197 = vmatprep.subr.mxu0 0.0
  %1198 = vmatpush1.msra.mxu0 %v389
  %1199 = vmatprep.subr.mxu0 0.0
  %1200 = vmatpush1.msra.mxu0 %v390
  %1201 = vmatprep.subr.mxu0 0.0
  %1202 = vmatpush1.msra.mxu0 %v391
  %1203 = vmatprep.subr.mxu0 0.0
  %1204 = vmatpush1.msra.mxu0 %v392
  %1205 = vmatprep.subr.mxu0 0.0
  %1206 = vmatpush1.msra.mxu0 %v393
  %1207 = vmatprep.subr.mxu0 0.0
  %1208 = vmatpush1.msra.mxu0 %v394
  %1209 = vmatprep.subr.mxu0 0.0
  %1210 = vmatpush1.msra.mxu0 %v395
  %1211 = vmatprep.subr.mxu0 0.0
  %1212 = vmatpush1.msra.mxu0 %v396
  %1213 = vmatprep.subr.mxu0 0.0
  %1214 = vmatpush1.msra.mxu0 %v397
  %1215 = vmatprep.subr.mxu0 0.0
  %1216 = vmatpush1.msra.mxu0 %v398
  %1217 = vmatprep.subr.mxu0 0.0
  %1218 = vmatpush1.msra.mxu0 %v399
  %1219 = vmatprep.mubr.f32.mxu0 %v44
  %1220 = vmatmul.mubr.f32.gmra.mrb[0].mxu0 %v43
  %v1221 = vpop.f32.mrb[0].mxu0
  %v1222 = vadd.f32 %v1152, %v1221
  %v1223 = vpop.f32.mrb[0].mxu0
  %1224 = vdwg.mxu0
  %1225 = vmatprep.subr.mxu0 0.0
  %1226 = vmatpush1.msra.mxu0 %v400
  %1227 = vmatprep.subr.mxu0 0.0
  %1228 = vmatpush1.msra.mxu0 %v401
  %1229 = vmatprep.subr.mxu0 0.0
  %1230 = vmatpush1.msra.mxu0 %v402
  %1231 = vmatprep.subr.mxu0 0.0
  %1232 = vmatpush1.msra.mxu0 %v403
  %1233 = vmatprep.subr.mxu0 0.0
  %1234 = vmatpush1.msra.mxu0 %v404
  %1235 = vmatprep.subr.mxu0 0.0
  %1236 = vmatpush1.msra.mxu0 %v405
  %1237 = vmatprep.subr.mxu0 0.0
  %1238 = vmatpush1.msra.mxu0 %v406
  %1239 = vmatprep.subr.mxu0 0.0
  %1240 = vmatpush1.msra.mxu0 %v407
  %1241 = vmatprep.subr.mxu0 0.0
  %1242 = vmatpush1.msra.mxu0 %v408
  %1243 = vmatprep.subr.mxu0 0.0
  %1244 = vmatpush1.msra.mxu0 %v409
  %1245 = vmatprep.subr.mxu0 0.0
  %1246 = vmatpush1.msra.mxu0 %v410
  %1247 = vmatprep.subr.mxu0 0.0
  %1248 = vmatpush1.msra.mxu0 %v411
  %1249 = vmatprep.subr.mxu0 0.0
  %1250 = vmatpush1.msra.mxu0 %v412
  %1251 = vmatprep.subr.mxu0 0.0
  %1252 = vmatpush1.msra.mxu0 %v413
  %1253 = vmatprep.subr.mxu0 0.0
  %1254 = vmatpush1.msra.mxu0 %v414
  %1255 = vmatprep.subr.mxu0 0.0
  %1256 = vmatpush1.msra.mxu0 %v415
  %1257 = vmatprep.subr.mxu0 0.0
  %1258 = vmatpush1.msra.mxu0 %v416
  %1259 = vmatprep.subr.mxu0 0.0
  %1260 = vmatpush1.msra.mxu0 %v417
  %1261 = vmatprep.subr.mxu0 0.0
  %1262 = vmatpush1.msra.mxu0 %v418
  %1263 = vmatprep.subr.mxu0 0.0
  %1264 = vmatpush1.msra.mxu0 %v419
  %1265 = vmatprep.subr.mxu0 0.0
  %1266 = vmatpush1.msra.mxu0 %v420
  %1267 = vmatprep.subr.mxu0 0.0
  %1268 = vmatpush1.msra.mxu0 %v421
  %1269 = vmatprep.subr.mxu0 0.0
  %1270 = vmatpush1.msra.mxu0 %v422
  %1271 = vmatprep.subr.mxu0 0.0
  %1272 = vmatpush1.msra.mxu0 %v423
  %1273 = vmatprep.subr.mxu0 0.0
  %1274 = vmatpush1.msra.mxu0 %v424
  %1275 = vmatprep.subr.mxu0 0.0
  %1276 = vmatpush1.msra.mxu0 %v425
  %1277 = vmatprep.subr.mxu0 0.0
  %1278 = vmatpush1.msra.mxu0 %v426
  %1279 = vmatprep.subr.mxu0 0.0
  %1280 = vmatpush1.msra.mxu0 %v427
  %1281 = vmatprep.subr.mxu0 0.0
  %1282 = vmatpush1.msra.mxu0 %v428
  %1283 = vmatprep.subr.mxu0 0.0
  %1284 = vmatpush1.msra.mxu0 %v429
  %1285 = vmatprep.subr.mxu0 0.0
  %1286 = vmatpush1.msra.mxu0 %v430
  %1287 = vmatprep.subr.mxu0 0.0
  %1288 = vmatpush1.msra.mxu0 %v431
  %1289 = vmatprep.mubr.f32.mxu0 %v46
  %1290 = vmatmul.mubr.f32.gmra.mrb[0].mxu0 %v45
  %v1291 = vpop.f32.mrb[0].mxu0
  %v1292 = vadd.f32 %v1222, %v1291
  %v1293 = vpop.f32.mrb[0].mxu0
  %1294 = vdwg.mxu0
  %1295 = vmatprep.subr.mxu0 0.0
  %1296 = vmatpush1.msra.mxu0 %v432
  %1297 = vmatprep.subr.mxu0 0.0
  %1298 = vmatpush1.msra.mxu0 %v433
  %1299 = vmatprep.subr.mxu0 0.0
  %1300 = vmatpush1.msra.mxu0 %v434
  %1301 = vmatprep.subr.mxu0 0.0
  %1302 = vmatpush1.msra.mxu0 %v435
  %1303 = vmatprep.subr.mxu0 0.0
  %1304 = vmatpush1.msra.mxu0 %v436
  %1305 = vmatprep.subr.mxu0 0.0
  %1306 = vmatpush1.msra.mxu0 %v437
  %1307 = vmatprep.subr.mxu0 0.0
  %1308 = vmatpush1.msra.mxu0 %v438
  %1309 = vmatprep.subr.mxu0 0.0
  %1310 = vmatpush1.msra.mxu0 %v439
  %1311 = vmatprep.subr.mxu0 0.0
  %1312 = vmatpush1.msra.mxu0 %v440
  %1313 = vmatprep.subr.mxu0 0.0
  %1314 = vmatpush1.msra.mxu0 %v441
  %1315 = vmatprep.subr.mxu0 0.0
  %1316 = vmatpush1.msra.mxu0 %v442
  %1317 = vmatprep.subr.mxu0 0.0
  %1318 = vmatpush1.msra.mxu0 %v443
  %1319 = vmatprep.subr.mxu0 0.0
  %1320 = vmatpush1.msra.mxu0 %v444
  %1321 = vmatprep.subr.mxu0 0.0
  %1322 = vmatpush1.msra.mxu0 %v445
  %1323 = vmatprep.subr.mxu0 0.0
  %1324 = vmatpush1.msra.mxu0 %v446
  %1325 = vmatprep.subr.mxu0 0.0
  %1326 = vmatpush1.msra.mxu0 %v447
  %1327 = vmatprep.subr.mxu0 0.0
  %1328 = vmatpush1.msra.mxu0 0.0
  %1329 = vmatprep.subr.mxu0 0.0
  %1330 = vmatpush1.msra.mxu0 0.0
  %1331 = vmatprep.subr.mxu0 0.0
  %1332 = vmatpush1.msra.mxu0 0.0
  %1333 = vmatprep.subr.mxu0 0.0
  %1334 = vmatpush1.msra.mxu0 0.0
  %1335 = vmatprep.subr.mxu0 0.0
  %1336 = vmatpush1.msra.mxu0 0.0
  %1337 = vmatprep.subr.mxu0 0.0
  %1338 = vmatpush1.msra.mxu0 0.0
  %1339 = vmatprep.subr.mxu0 0.0
  %1340 = vmatpush1.msra.mxu0 0.0
  %1341 = vmatprep.subr.mxu0 0.0
  %1342 = vmatpush1.msra.mxu0 0.0
  %1343 = vmatprep.subr.mxu0 0.0
  %1344 = vmatpush1.msra.mxu0 0.0
  %1345 = vmatprep.subr.mxu0 0.0
  %1346 = vmatpush1.msra.mxu0 0.0
  %1347 = vmatprep.subr.mxu0 0.0
  %1348 = vmatpush1.msra.mxu0 0.0
  %1349 = vmatprep.subr.mxu0 0.0
  %1350 = vmatpush1.msra.mxu0 0.0
  %1351 = vmatprep.subr.mxu0 0.0
  %1352 = vmatpush1.msra.mxu0 0.0
  %1353 = vmatprep.subr.mxu0 0.0
  %1354 = vmatpush1.msra.mxu0 0.0
  %1355 = vmatprep.subr.mxu0 0.0
  %1356 = vmatpush1.msra.mxu0 0.0
  %1357 = vmatprep.subr.mxu0 0.0
  %1358 = vmatpush1.msra.mxu0 0.0
  %1359 = vmatprep.mubr.f32.mxu0 0.0
  %1360 = vmatmul.mubr.f32.gmra.mrb[0].mxu0 %v47
  %v1361 = vpop.f32.mrb[0].mxu0
  %v1362 = vadd.f32 %v1292, %v1361
  %v1363 = vpop.f32.mrb[0].mxu0
  %1364 = vdwg.mxu0
  %v1365 = vld [vmem:[%s5] sm:$0xff]
  %v1366 = vld [vmem:[%s5 + $0x8] sm:$0xff]
  %v1367 = vld [vmem:[%s5 + $0x10] sm:$0xff]
  %v1368 = vld [vmem:[%s5 + $0x18] sm:$0xff]
  %v1369 = vld [vmem:[%s5 + $0x20] sm:$0xff]
  %v1370 = vld [vmem:[%s5 + $0x28] sm:$0xff]
  %v1371 = vld [vmem:[%s5 + $0x30] sm:$0xff]
  %v1372 = vld [vmem:[%s5 + $0x38] sm:$0xff]
  %v1373 = vld [vmem:[%s5 + $0x40] sm:$0xff]
  %v1374 = vld [vmem:[%s5 + $0x48] sm:$0xff]
  %v1375 = vld [vmem:[%s5 + $0x50] sm:$0xff]
  %v1376 = vld [vmem:[%s5 + $0x58] sm:$0xff]
  %v1377 = vld [vmem:[%s5 + $0x60] sm:$0xff]
  %v1378 = vld [vmem:[%s5 + $0x68] sm:$0xff]
  %v1379 = vld [vmem:[%s5 + $0x70] sm:$0xff]
  %v1380 = vld [vmem:[%s5 + $0x78] sm:$0xff]
  %1381 = vmatprep.subr.mxu0 0.0
  %1382 = vmatpush1.msra.mxu0 %v1365
  %1383 = vmatprep.subr.mxu0 0.0
  %1384 = vmatpush1.msra.mxu0 %v1366
  %1385 = vmatprep.subr.mxu0 0.0
  %1386 = vmatpush1.msra.mxu0 %v1367
  %1387 = vmatprep.subr.mxu0 0.0
  %1388 = vmatpush1.msra.mxu0 %v1368
  %1389 = vmatprep.subr.mxu0 0.0
  %1390 = vmatpush1.msra.mxu0 %v1369
  %1391 = vmatprep.subr.mxu0 0.0
  %1392 = vmatpush1.msra.mxu0 %v1370
  %1393 = vmatprep.subr.mxu0 0.0
  %1394 = vmatpush1.msra.mxu0 %v1371
  %1395 = vmatprep.subr.mxu0 0.0
  %1396 = vmatpush1.msra.mxu0 %v1372
  %1397 = vmatprep.subr.mxu0 0.0
  %1398 = vmatpush1.msra.mxu0 %v1373
  %1399 = vmatprep.subr.mxu0 0.0
  %1400 = vmatpush1.msra.mxu0 %v1374
  %1401 = vmatprep.subr.mxu0 0.0
  %1402 = vmatpush1.msra.mxu0 %v1375
  %1403 = vmatprep.subr.mxu0 0.0
  %1404 = vmatpush1.msra.mxu0 %v1376
  %1405 = vmatprep.subr.mxu0 0.0
  %1406 = vmatpush1.msra.mxu0 %v1377
  %1407 = vmatprep.subr.mxu0 0.0
  %1408 = vmatpush1.msra.mxu0 %v1378
  %1409 = vmatprep.subr.mxu0 0.0
  %1410 = vmatpush1.msra.mxu0 %v1379
  %1411 = vmatprep.subr.mxu0 0.0
  %1412 = vmatpush1.msra.mxu0 %v1380
  %1413 = vmatprep.subr.mxu0 0.0
  %1414 = vmatpush1.msra.mxu0 0.0
  %1415 = vmatprep.subr.mxu0 0.0
  %1416 = vmatpush1.msra.mxu0 0.0
  %1417 = vmatprep.subr.mxu0 0.0
  %1418 = vmatpush1.msra.mxu0 0.0
  %1419 = vmatprep.subr.mxu0 0.0
  %1420 = vmatpush1.msra.mxu0 0.0
  %1421 = vmatprep.subr.mxu0 0.0
  %1422 = vmatpush1.msra.mxu0 0.0
  %1423 = vmatprep.subr.mxu0 0.0
  %1424 = vmatpush1.msra.mxu0 0.0
  %1425 = vmatprep.subr.mxu0 0.0
  %1426 = vmatpush1.msra.mxu0 0.0
  %1427 = vmatprep.subr.mxu0 0.0
  %1428 = vmatpush1.msra.mxu0 0.0
  %1429 = vmatprep.subr.mxu0 0.0
  %1430 = vmatpush1.msra.mxu0 0.0
  %1431 = vmatprep.subr.mxu0 0.0
  %1432 = vmatpush1.msra.mxu0 0.0
  %1433 = vmatprep.subr.mxu0 0.0
  %1434 = vmatpush1.msra.mxu0 0.0
  %1435 = vmatprep.subr.mxu0 0.0
  %1436 = vmatpush1.msra.mxu0 0.0
  %1437 = vmatprep.subr.mxu0 0.0
  %1438 = vmatpush1.msra.mxu0 0.0
  %1439 = vmatprep.subr.mxu0 0.0
  %1440 = vmatpush1.msra.mxu0 0.0
  %1441 = vmatprep.subr.mxu0 0.0
  %1442 = vmatpush1.msra.mxu0 0.0
  %1443 = vmatprep.subr.mxu0 0.0
  %1444 = vmatpush1.msra.mxu0 0.0
  %1445 = vmatprep.mubr.f32.mxu0 0.0
  %1446 = vmatmul.mubr.f32.gmra.mrb[0].mxu0 %v1362
  %v1447 = vpop.f32.mrb[0].mxu0
  %v1448 = vadd.f32 0.0, %v1447
  %v1449 = vpop.f32.mrb[0].mxu0
  %1450 = vdwg.mxu0
  %v1451 = vsub.f32 %v1362, %v1448
  %v1452 = vmul.f32 %v1451, %v1451
  %1453 = vmatprep.subr.mxu0 0.0
  %1454 = vmatpush1.msra.mxu0 %v1365
  %1455 = vmatprep.subr.mxu0 0.0
  %1456 = vmatpush1.msra.mxu0 %v1366
  %1457 = vmatprep.subr.mxu0 0.0
  %1458 = vmatpush1.msra.mxu0 %v1367
  %1459 = vmatprep.subr.mxu0 0.0
  %1460 = vmatpush1.msra.mxu0 %v1368
  %1461 = vmatprep.subr.mxu0 0.0
  %1462 = vmatpush1.msra.mxu0 %v1369
  %1463 = vmatprep.subr.mxu0 0.0
  %1464 = vmatpush1.msra.mxu0 %v1370
  %1465 = vmatprep.subr.mxu0 0.0
  %1466 = vmatpush1.msra.mxu0 %v1371
  %1467 = vmatprep.subr.mxu0 0.0
  %1468 = vmatpush1.msra.mxu0 %v1372
  %1469 = vmatprep.subr.mxu0 0.0
  %1470 = vmatpush1.msra.mxu0 %v1373
  %1471 = vmatprep.subr.mxu0 0.0
  %1472 = vmatpush1.msra.mxu0 %v1374
  %1473 = vmatprep.subr.mxu0 0.0
  %1474 = vmatpush1.msra.mxu0 %v1375
  %1475 = vmatprep.subr.mxu0 0.0
  %1476 = vmatpush1.msra.mxu0 %v1376
  %1477 = vmatprep.subr.mxu0 0.0
  %1478 = vmatpush1.msra.mxu0 %v1377
  %1479 = vmatprep.subr.mxu0 0.0
  %1480 = vmatpush1.msra.mxu0 %v1378
  %1481 = vmatprep.subr.mxu0 0.0
  %1482 = vmatpush1.msra.mxu0 %v1379
  %1483 = vmatprep.subr.mxu0 0.0
  %1484 = vmatpush1.msra.mxu0 %v1380
  %1485 = vmatprep.subr.mxu0 0.0
  %1486 = vmatpush1.msra.mxu0 0.0
  %1487 = vmatprep.subr.mxu0 0.0
  %1488 = vmatpush1.msra.mxu0 0.0
  %1489 = vmatprep.subr.mxu0 0.0
  %1490 = vmatpush1.msra.mxu0 0.0
  %1491 = vmatprep.subr.mxu0 0.0
  %1492 = vmatpush1.msra.mxu0 0.0
  %1493 = vmatprep.subr.mxu0 0.0
  %1494 = vmatpush1.msra.mxu0 0.0
  %1495 = vmatprep.subr.mxu0 0.0
  %1496 = vmatpush1.msra.mxu0 0.0
  %1497 = vmatprep.subr.mxu0 0.0
  %1498 = vmatpush1.msra.mxu0 0.0
  %1499 = vmatprep.subr.mxu0 0.0
  %1500 = vmatpush1.msra.mxu0 0.0
  %1501 = vmatprep.subr.mxu0 0.0
  %1502 = vmatpush1.msra.mxu0 0.0
  %1503 = vmatprep.subr.mxu0 0.0
  %1504 = vmatpush1.msra.mxu0 0.0
  %1505 = vmatprep.subr.mxu0 0.0
  %1506 = vmatpush1.msra.mxu0 0.0
  %1507 = vmatprep.subr.mxu0 0.0
  %1508 = vmatpush1.msra.mxu0 0.0
  %1509 = vmatprep.subr.mxu0 0.0
  %1510 = vmatpush1.msra.mxu0 0.0
  %1511 = vmatprep.subr.mxu0 0.0
  %1512 = vmatpush1.msra.mxu0 0.0
  %1513 = vmatprep.subr.mxu0 0.0
  %1514 = vmatpush1.msra.mxu0 0.0
  %1515 = vmatprep.subr.mxu0 0.0
  %1516 = vmatpush1.msra.mxu0 0.0
  %1517 = vmatprep.mubr.f32.mxu0 0.0
  %1518 = vmatmul.mubr.f32.gmra.mrb[0].mxu0 %v1452
  %v1519 = vpop.f32.mrb[0].mxu0
  %v1520 = vadd.f32 1e-05, %v1519
  %v1521 = vpop.f32.mrb[0].mxu0
  %1522 = vdwg.mxu0
  %v1523 = vrsqrt.pop %v1520
  %v1524 = vmul.f32 %v1451, %v1523
  %v1525 = vld [vmem:[%s3] sm:$0x1]
  %v1527 = vlaneseq
  %v1528 = vshrl.u32 %v1527, 7
  %v1529 = vsub.s32 0, %v1528
  %v1530 = vrot.slane %v1525, %v1529
  %v1532 = vmul.f32 %v1524, %v1530
  %v1533 = vld [vmem:[%s4] sm:$0x1]
  %v1535 = vlaneseq
  %v1536 = vshrl.u32 %v1535, 7
  %v1537 = vsub.s32 0, %v1536
  %v1538 = vrot.slane %v1533, %v1537
  %v1540 = vadd.f32 %v1532, %v1538
  %v1541 = vmul.f32 %v1540, 0.5
  %v1542 = vmul.f32 %v1540, 0.70710677
  %v1543 = verf.f32.pop %v1542
  %v1544 = vadd.f32 %v1543, 1.0
  %v1545 = vmul.f32 %v1541, %v1544
  %1546 = vst [vmem:[%s6] sm:$0xff] %v1545
  // Predicated region
  $region26: #{a_call__.3} parent=0 // pred_check
    _
  $region27: #{a_call__.3} parent=0 // pred_check_branch
    %1548 = sbr.rel (0) target = $region29
  $region28: #{a_call__.3} parent=0 // pred_region
    _
  $region29: #{a_call__.3} parent=0 // pred_fallthru
    _
  // Predicated region
  $region30: #{a_call__.3} parent=0 // pred_check
    _
  $region31: #{a_call__.3} parent=0 // pred_check_branch
    %1550 = sbr.rel (0) target = $region33
  $region32: #{a_call__.3} parent=0 // pred_region
    _
  $region33: #{a_call__.3} parent=0 // pred_fallthru
    _

// kernel: a_call__.4
$region0: #{a_call__.4}
  #allocation0 [shape = 'u32[]', space=smem, size = 0x4, offset = 0x4, fixed_abs, tag = 'smem constant byte address 0x4 - core index']
  #allocation1 [shape = 'u32[144,128]{1,0:T(1,128)}', space=vmem, size = 0x12000, scoped, tag = 'internal scratch']
  %s0 = inlined_call_operand.vmem [shape: f32[8,640], index: 0, kind: input, shape index: {}]
  %s1 = inlined_call_operand.vmem [shape: f32[640,128], index: 1, kind: input, shape index: {}]
  %s2 = inlined_call_operand.vmem [shape: f32[1,128], index: 2, kind: input, shape index: {}]
  %s3 = inlined_call_operand.vmem [shape: f32[1,128], index: 3, kind: input, shape index: {}]
  %s4 = inlined_call_operand.vmem [shape: f32[1,128], index: 4, kind: input, shape index: {}]
  %s5 = inlined_call_operand.vmem [shape: f32[128,128], index: 5, kind: input, shape index: {}]
  %s6 = inlined_call_operand.vmem [shape: f32[8,128], index: 6, kind: output, shape index: {}]
  %s7 = sld [smem:[#allocation0]]
  $region34: #{a_call__.4} parent=0
    _
  %s9 = ssub.s32 1, %s7
  %s10 = scalar_select 0, %s9, %s7
  // Predicated region
  $region2: #{a_call__.4} parent=0 // pred_check
    _
  $region3: #{a_call__.4} parent=0 // pred_check_branch
    %12 = sbr.rel (0) target = $region5
  $region4: #{a_call__.4} parent=0 // pred_region
    _
  $region5: #{a_call__.4} parent=0 // pred_fallthru
    _
  // Predicated region
  $region6: #{a_call__.4} parent=0 // pred_check
    _
  $region7: #{a_call__.4} parent=0 // pred_check_branch
    %14 = sbr.rel (0) target = $region9
  $region8: #{a_call__.4} parent=0 // pred_region
    _
  $region9: #{a_call__.4} parent=0 // pred_fallthru
    _
  // Predicated region
  $region10: #{a_call__.4} parent=0 // pred_check
    _
  $region11: #{a_call__.4} parent=0 // pred_check_branch
    %16 = sbr.rel (0) target = $region13
  $region12: #{a_call__.4} parent=0 // pred_region
    _
  $region13: #{a_call__.4} parent=0 // pred_fallthru
    _
  // Predicated region
  $region14: #{a_call__.4} parent=0 // pred_check
    _
  $region15: #{a_call__.4} parent=0 // pred_check_branch
    %18 = sbr.rel (0) target = $region17
  $region16: #{a_call__.4} parent=0 // pred_region
    _
  $region17: #{a_call__.4} parent=0 // pred_fallthru
    _
  // Predicated region
  $region18: #{a_call__.4} parent=0 // pred_check
    _
  $region19: #{a_call__.4} parent=0 // pred_check_branch
    %20 = sbr.rel (0) target = $region21
  $region20: #{a_call__.4} parent=0 // pred_region
    _
  $region21: #{a_call__.4} parent=0 // pred_fallthru
    _
  // Predicated region
  $region22: #{a_call__.4} parent=0 // pred_check
    _
  $region23: #{a_call__.4} parent=0 // pred_check_branch
    %22 = sbr.rel (0) target = $region25
  $region24: #{a_call__.4} parent=0 // pred_region
    _
  $region25: #{a_call__.4} parent=0 // pred_fallthru
    _
  %v23 = vld [vmem:[%s0] sm:$0xff]
  %v24 = vld [vmem:[%s0 + $0x8] sm:$0xff]
  %v25 = vld [vmem:[%s0 + $0x10] sm:$0xff]
  %v26 = vld [vmem:[%s0 + $0x18] sm:$0xff]
  %v27 = vld [vmem:[%s0 + $0x20] sm:$0xff]
  %v28 = vld [vmem:[%s1] sm:$0xff]
  %v29 = vld [vmem:[%s1 + $0x8] sm:$0xff]
  %v30 = vld [vmem:[%s1 + $0x10] sm:$0xff]
  %v31 = vld [vmem:[%s1 + $0x18] sm:$0xff]
  %v32 = vld [vmem:[%s1 + $0x20] sm:$0xff]
  %v33 = vld [vmem:[%s1 + $0x28] sm:$0xff]
  %v34 = vld [vmem:[%s1 + $0x30] sm:$0xff]
  %v35 = vld [vmem:[%s1 + $0x38] sm:$0xff]
  %v36 = vld [vmem:[%s1 + $0x40] sm:$0xff]
  %v37 = vld [vmem:[%s1 + $0x48] sm:$0xff]
  %v38 = vld [vmem:[%s1 + $0x50] sm:$0xff]
  %v39 = vld [vmem:[%s1 + $0x58] sm:$0xff]
  %v40 = vld [vmem:[%s1 + $0x60] sm:$0xff]
  %v41 = vld [vmem:[%s1 + $0x68] sm:$0xff]
  %v42 = vld [vmem:[%s1 + $0x70] sm:$0xff]
  %v43 = vld [vmem:[%s1 + $0x78] sm:$0xff]
  %v44 = vld [vmem:[%s1 + $0x80] sm:$0xff]
  %v45 = vld [vmem:[%s1 + $0x88] sm:$0xff]
  %v46 = vld [vmem:[%s1 + $0x90] sm:$0xff]
  %v47 = vld [vmem:[%s1 + $0x98] sm:$0xff]
  %v48 = vld [vmem:[%s1 + $0xa0] sm:$0xff]
  %v49 = vld [vmem:[%s1 + $0xa8] sm:$0xff]
  %v50 = vld [vmem:[%s1 + $0xb0] sm:$0xff]
  %v51 = vld [vmem:[%s1 + $0xb8] sm:$0xff]
  %v52 = vld [vmem:[%s1 + $0xc0] sm:$0xff]
  %v53 = vld [vmem:[%s1 + $0xc8] sm:$0xff]
  %v54 = vld [vmem:[%s1 + $0xd0] sm:$0xff]
  %v55 = vld [vmem:[%s1 + $0xd8] sm:$0xff]
  %v56 = vld [vmem:[%s1 + $0xe0] sm:$0xff]
  %v57 = vld [vmem:[%s1 + $0xe8] sm:$0xff]
  %v58 = vld [vmem:[%s1 + $0xf0] sm:$0xff]
  %v59 = vld [vmem:[%s1 + $0xf8] sm:$0xff]
  %v60 = vld [vmem:[%s1 + $0x100] sm:$0xff]
  %v61 = vld [vmem:[%s1 + $0x108] sm:$0xff]
  %v62 = vld [vmem:[%s1 + $0x110] sm:$0xff]
  %v63 = vld [vmem:[%s1 + $0x118] sm:$0xff]
  %v64 = vld [vmem:[%s1 + $0x120] sm:$0xff]
  %v65 = vld [vmem:[%s1 + $0x128] sm:$0xff]
  %v66 = vld [vmem:[%s1 + $0x130] sm:$0xff]
  %v67 = vld [vmem:[%s1 + $0x138] sm:$0xff]
  %v68 = vld [vmem:[%s1 + $0x140] sm:$0xff]
  %v69 = vld [vmem:[%s1 + $0x148] sm:$0xff]
  %v70 = vld [vmem:[%s1 + $0x150] sm:$0xff]
  %v71 = vld [vmem:[%s1 + $0x158] sm:$0xff]
  %v72 = vld [vmem:[%s1 + $0x160] sm:$0xff]
  %v73 = vld [vmem:[%s1 + $0x168] sm:$0xff]
  %v74 = vld [vmem:[%s1 + $0x170] sm:$0xff]
  %v75 = vld [vmem:[%s1 + $0x178] sm:$0xff]
  %v76 = vld [vmem:[%s1 + $0x180] sm:$0xff]
  %v77 = vld [vmem:[%s1 + $0x188] sm:$0xff]
  %v78 = vld [vmem:[%s1 + $0x190] sm:$0xff]
  %v79 = vld [vmem:[%s1 + $0x198] sm:$0xff]
  %v80 = vld [vmem:[%s1 + $0x1a0] sm:$0xff]
  %v81 = vld [vmem:[%s1 + $0x1a8] sm:$0xff]
  %v82 = vld [vmem:[%s1 + $0x1b0] sm:$0xff]
  %v83 = vld [vmem:[%s1 + $0x1b8] sm:$0xff]
  %v84 = vld [vmem:[%s1 + $0x1c0] sm:$0xff]
  %v85 = vld [vmem:[%s1 + $0x1c8] sm:$0xff]
  %v86 = vld [vmem:[%s1 + $0x1d0] sm:$0xff]
  %v87 = vld [vmem:[%s1 + $0x1d8] sm:$0xff]
  %v88 = vld [vmem:[%s1 + $0x1e0] sm:$0xff]
  %v89 = vld [vmem:[%s1 + $0x1e8] sm:$0xff]
  %v90 = vld [vmem:[%s1 + $0x1f0] sm:$0xff]
  %v91 = vld [vmem:[%s1 + $0x1f8] sm:$0xff]
  %v92 = vld [vmem:[%s1 + $0x200] sm:$0xff]
  %v93 = vld [vmem:[%s1 + $0x208] sm:$0xff]
  %v94 = vld [vmem:[%s1 + $0x210] sm:$0xff]
  %v95 = vld [vmem:[%s1 + $0x218] sm:$0xff]
  %v96 = vld [vmem:[%s1 + $0x220] sm:$0xff]
  %v97 = vld [vmem:[%s1 + $0x228] sm:$0xff]
  %v98 = vld [vmem:[%s1 + $0x230] sm:$0xff]
  %v99 = vld [vmem:[%s1 + $0x238] sm:$0xff]
  %v100 = vld [vmem:[%s1 + $0x240] sm:$0xff]
  %v101 = vld [vmem:[%s1 + $0x248] sm:$0xff]
  %v102 = vld [vmem:[%s1 + $0x250] sm:$0xff]
  %v103 = vld [vmem:[%s1 + $0x258] sm:$0xff]
  %v104 = vld [vmem:[%s1 + $0x260] sm:$0xff]
  %v105 = vld [vmem:[%s1 + $0x268] sm:$0xff]
  %v106 = vld [vmem:[%s1 + $0x270] sm:$0xff]
  %v107 = vld [vmem:[%s1 + $0x278] sm:$0xff]
  %v108 = vld [vmem:[%s2] sm:$0x1]
  %v110 = vlaneseq
  %v111 = vshrl.u32 %v110, 7
  %v112 = vsub.s32 0, %v111
  %v113 = vrot.slane %v108, %v112
  %115 = vmatprep.subr.mxu0 0.0
  %116 = vmatpush1.msra.mxu0 %v28
  %117 = vmatprep.subr.mxu0 0.0
  %118 = vmatpush1.msra.mxu0 %v29
  %119 = vmatprep.subr.mxu0 0.0
  %120 = vmatpush1.msra.mxu0 %v30
  %121 = vmatprep.subr.mxu0 0.0
  %122 = vmatpush1.msra.mxu0 %v31
  %123 = vmatprep.subr.mxu0 0.0
  %124 = vmatpush1.msra.mxu0 %v32
  %125 = vmatprep.subr.mxu0 0.0
  %126 = vmatpush1.msra.mxu0 %v33
  %127 = vmatprep.subr.mxu0 0.0
  %128 = vmatpush1.msra.mxu0 %v34
  %129 = vmatprep.subr.mxu0 0.0
  %130 = vmatpush1.msra.mxu0 %v35
  %131 = vmatprep.subr.mxu0 0.0
  %132 = vmatpush1.msra.mxu0 %v36
  %133 = vmatprep.subr.mxu0 0.0
  %134 = vmatpush1.msra.mxu0 %v37
  %135 = vmatprep.subr.mxu0 0.0
  %136 = vmatpush1.msra.mxu0 %v38
  %137 = vmatprep.subr.mxu0 0.0
  %138 = vmatpush1.msra.mxu0 %v39
  %139 = vmatprep.subr.mxu0 0.0
  %140 = vmatpush1.msra.mxu0 %v40
  %141 = vmatprep.subr.mxu0 0.0
  %142 = vmatpush1.msra.mxu0 %v41
  %143 = vmatprep.subr.mxu0 0.0
  %144 = vmatpush1.msra.mxu0 %v42
  %145 = vmatprep.subr.mxu0 0.0
  %146 = vmatpush1.msra.mxu0 %v43
  %147 = vmatprep.subr.mxu0 0.0
  %148 = vmatpush1.msra.mxu0 %v44
  %149 = vmatprep.subr.mxu0 0.0
  %150 = vmatpush1.msra.mxu0 %v45
  %151 = vmatprep.subr.mxu0 0.0
  %152 = vmatpush1.msra.mxu0 %v46
  %153 = vmatprep.subr.mxu0 0.0
  %154 = vmatpush1.msra.mxu0 %v47
  %155 = vmatprep.subr.mxu0 0.0
  %156 = vmatpush1.msra.mxu0 %v48
  %157 = vmatprep.subr.mxu0 0.0
  %158 = vmatpush1.msra.mxu0 %v49
  %159 = vmatprep.subr.mxu0 0.0
  %160 = vmatpush1.msra.mxu0 %v50
  %161 = vmatprep.subr.mxu0 0.0
  %162 = vmatpush1.msra.mxu0 %v51
  %163 = vmatprep.subr.mxu0 0.0
  %164 = vmatpush1.msra.mxu0 %v52
  %165 = vmatprep.subr.mxu0 0.0
  %166 = vmatpush1.msra.mxu0 %v53
  %167 = vmatprep.subr.mxu0 0.0
  %168 = vmatpush1.msra.mxu0 %v54
  %169 = vmatprep.subr.mxu0 0.0
  %170 = vmatpush1.msra.mxu0 %v55
  %171 = vmatprep.subr.mxu0 0.0
  %172 = vmatpush1.msra.mxu0 %v56
  %173 = vmatprep.subr.mxu0 0.0
  %174 = vmatpush1.msra.mxu0 %v57
  %175 = vmatprep.subr.mxu0 0.0
  %176 = vmatpush1.msra.mxu0 %v58
  %177 = vmatprep.subr.mxu0 0.0
  %178 = vmatpush1.msra.mxu0 %v59
  %179 = vmatprep.mubr.f32.mxu0 %v24
  %180 = vmatmul.mubr.f32.gmra.mrb[0].mxu0 %v23
  %v181 = vpop.f32.mrb[0].mxu0
  %v182 = vadd.f32 %v113, %v181
  %v183 = vpop.f32.mrb[0].mxu0
  %184 = vdwg.mxu0
  %185 = vmatprep.subr.mxu0 0.0
  %186 = vmatpush1.msra.mxu0 %v60
  %187 = vmatprep.subr.mxu0 0.0
  %188 = vmatpush1.msra.mxu0 %v61
  %189 = vmatprep.subr.mxu0 0.0
  %190 = vmatpush1.msra.mxu0 %v62
  %191 = vmatprep.subr.mxu0 0.0
  %192 = vmatpush1.msra.mxu0 %v63
  %193 = vmatprep.subr.mxu0 0.0
  %194 = vmatpush1.msra.mxu0 %v64
  %195 = vmatprep.subr.mxu0 0.0
  %196 = vmatpush1.msra.mxu0 %v65
  %197 = vmatprep.subr.mxu0 0.0
  %198 = vmatpush1.msra.mxu0 %v66
  %199 = vmatprep.subr.mxu0 0.0
  %200 = vmatpush1.msra.mxu0 %v67
  %201 = vmatprep.subr.mxu0 0.0
  %202 = vmatpush1.msra.mxu0 %v68
  %203 = vmatprep.subr.mxu0 0.0
  %204 = vmatpush1.msra.mxu0 %v69
  %205 = vmatprep.subr.mxu0 0.0
  %206 = vmatpush1.msra.mxu0 %v70
  %207 = vmatprep.subr.mxu0 0.0
  %208 = vmatpush1.msra.mxu0 %v71
  %209 = vmatprep.subr.mxu0 0.0
  %210 = vmatpush1.msra.mxu0 %v72
  %211 = vmatprep.subr.mxu0 0.0
  %212 = vmatpush1.msra.mxu0 %v73
  %213 = vmatprep.subr.mxu0 0.0
  %214 = vmatpush1.msra.mxu0 %v74
  %215 = vmatprep.subr.mxu0 0.0
  %216 = vmatpush1.msra.mxu0 %v75
  %217 = vmatprep.subr.mxu0 0.0
  %218 = vmatpush1.msra.mxu0 %v76
  %219 = vmatprep.subr.mxu0 0.0
  %220 = vmatpush1.msra.mxu0 %v77
  %221 = vmatprep.subr.mxu0 0.0
  %222 = vmatpush1.msra.mxu0 %v78
  %223 = vmatprep.subr.mxu0 0.0
  %224 = vmatpush1.msra.mxu0 %v79
  %225 = vmatprep.subr.mxu0 0.0
  %226 = vmatpush1.msra.mxu0 %v80
  %227 = vmatprep.subr.mxu0 0.0
  %228 = vmatpush1.msra.mxu0 %v81
  %229 = vmatprep.subr.mxu0 0.0
  %230 = vmatpush1.msra.mxu0 %v82
  %231 = vmatprep.subr.mxu0 0.0
  %232 = vmatpush1.msra.mxu0 %v83
  %233 = vmatprep.subr.mxu0 0.0
  %234 = vmatpush1.msra.mxu0 %v84
  %235 = vmatprep.subr.mxu0 0.0
  %236 = vmatpush1.msra.mxu0 %v85
  %237 = vmatprep.subr.mxu0 0.0
  %238 = vmatpush1.msra.mxu0 %v86
  %239 = vmatprep.subr.mxu0 0.0
  %240 = vmatpush1.msra.mxu0 %v87
  %241 = vmatprep.subr.mxu0 0.0
  %242 = vmatpush1.msra.mxu0 %v88
  %243 = vmatprep.subr.mxu0 0.0
  %244 = vmatpush1.msra.mxu0 %v89
  %245 = vmatprep.subr.mxu0 0.0
  %246 = vmatpush1.msra.mxu0 %v90
  %247 = vmatprep.subr.mxu0 0.0
  %248 = vmatpush1.msra.mxu0 %v91
  %249 = vmatprep.mubr.f32.mxu0 %v26
  %250 = vmatmul.mubr.f32.gmra.mrb[0].mxu0 %v25
  %v251 = vpop.f32.mrb[0].mxu0
  %v252 = vadd.f32 %v182, %v251
  %v253 = vpop.f32.mrb[0].mxu0
  %254 = vdwg.mxu0
  %255 = vmatprep.subr.mxu0 0.0
  %256 = vmatpush1.msra.mxu0 %v92
  %257 = vmatprep.subr.mxu0 0.0
  %258 = vmatpush1.msra.mxu0 %v93
  %259 = vmatprep.subr.mxu0 0.0
  %260 = vmatpush1.msra.mxu0 %v94
  %261 = vmatprep.subr.mxu0 0.0
  %262 = vmatpush1.msra.mxu0 %v95
  %263 = vmatprep.subr.mxu0 0.0
  %264 = vmatpush1.msra.mxu0 %v96
  %265 = vmatprep.subr.mxu0 0.0
  %266 = vmatpush1.msra.mxu0 %v97
  %267 = vmatprep.subr.mxu0 0.0
  %268 = vmatpush1.msra.mxu0 %v98
  %269 = vmatprep.subr.mxu0 0.0
  %270 = vmatpush1.msra.mxu0 %v99
  %271 = vmatprep.subr.mxu0 0.0
  %272 = vmatpush1.msra.mxu0 %v100
  %273 = vmatprep.subr.mxu0 0.0
  %274 = vmatpush1.msra.mxu0 %v101
  %275 = vmatprep.subr.mxu0 0.0
  %276 = vmatpush1.msra.mxu0 %v102
  %277 = vmatprep.subr.mxu0 0.0
  %278 = vmatpush1.msra.mxu0 %v103
  %279 = vmatprep.subr.mxu0 0.0
  %280 = vmatpush1.msra.mxu0 %v104
  %281 = vmatprep.subr.mxu0 0.0
  %282 = vmatpush1.msra.mxu0 %v105
  %283 = vmatprep.subr.mxu0 0.0
  %284 = vmatpush1.msra.mxu0 %v106
  %285 = vmatprep.subr.mxu0 0.0
  %286 = vmatpush1.msra.mxu0 %v107
  %287 = vmatprep.subr.mxu0 0.0
  %288 = vmatpush1.msra.mxu0 0.0
  %289 = vmatprep.subr.mxu0 0.0
  %290 = vmatpush1.msra.mxu0 0.0
  %291 = vmatprep.subr.mxu0 0.0
  %292 = vmatpush1.msra.mxu0 0.0
  %293 = vmatprep.subr.mxu0 0.0
  %294 = vmatpush1.msra.mxu0 0.0
  %295 = vmatprep.subr.mxu0 0.0
  %296 = vmatpush1.msra.mxu0 0.0
  %297 = vmatprep.subr.mxu0 0.0
  %298 = vmatpush1.msra.mxu0 0.0
  %299 = vmatprep.subr.mxu0 0.0
  %300 = vmatpush1.msra.mxu0 0.0
  %301 = vmatprep.subr.mxu0 0.0
  %302 = vmatpush1.msra.mxu0 0.0
  %303 = vmatprep.subr.mxu0 0.0
  %304 = vmatpush1.msra.mxu0 0.0
  %305 = vmatprep.subr.mxu0 0.0
  %306 = vmatpush1.msra.mxu0 0.0
  %307 = vmatprep.subr.mxu0 0.0
  %308 = vmatpush1.msra.mxu0 0.0
  %309 = vmatprep.subr.mxu0 0.0
  %310 = vmatpush1.msra.mxu0 0.0
  %311 = vmatprep.subr.mxu0 0.0
  %312 = vmatpush1.msra.mxu0 0.0
  %313 = vmatprep.subr.mxu0 0.0
  %314 = vmatpush1.msra.mxu0 0.0
  %315 = vmatprep.subr.mxu0 0.0
  %316 = vmatpush1.msra.mxu0 0.0
  %317 = vmatprep.subr.mxu0 0.0
  %318 = vmatpush1.msra.mxu0 0.0
  %319 = vmatprep.mubr.f32.mxu0 0.0
  %320 = vmatmul.mubr.f32.gmra.mrb[0].mxu0 %v27
  %v321 = vpop.f32.mrb[0].mxu0
  %v322 = vadd.f32 %v252, %v321
  %v323 = vpop.f32.mrb[0].mxu0
  %324 = vdwg.mxu0
  %v325 = vld [vmem:[%s5] sm:$0xff]
  %v326 = vld [vmem:[%s5 + $0x8] sm:$0xff]
  %v327 = vld [vmem:[%s5 + $0x10] sm:$0xff]
  %v328 = vld [vmem:[%s5 + $0x18] sm:$0xff]
  %v329 = vld [vmem:[%s5 + $0x20] sm:$0xff]
  %v330 = vld [vmem:[%s5 + $0x28] sm:$0xff]
  %v331 = vld [vmem:[%s5 + $0x30] sm:$0xff]
  %v332 = vld [vmem:[%s5 + $0x38] sm:$0xff]
  %v333 = vld [vmem:[%s5 + $0x40] sm:$0xff]
  %v334 = vld [vmem:[%s5 + $0x48] sm:$0xff]
  %v335 = vld [vmem:[%s5 + $0x50] sm:$0xff]
  %v336 = vld [vmem:[%s5 + $0x58] sm:$0xff]
  %v337 = vld [vmem:[%s5 + $0x60] sm:$0xff]
  %v338 = vld [vmem:[%s5 + $0x68] sm:$0xff]
  %v339 = vld [vmem:[%s5 + $0x70] sm:$0xff]
  %v340 = vld [vmem:[%s5 + $0x78] sm:$0xff]
  %341 = vmatprep.subr.mxu0 0.0
  %342 = vmatpush1.msra.mxu0 %v325
  %343 = vmatprep.subr.mxu0 0.0
  %344 = vmatpush1.msra.mxu0 %v326
  %345 = vmatprep.subr.mxu0 0.0
  %346 = vmatpush1.msra.mxu0 %v327
  %347 = vmatprep.subr.mxu0 0.0
  %348 = vmatpush1.msra.mxu0 %v328
  %349 = vmatprep.subr.mxu0 0.0
  %350 = vmatpush1.msra.mxu0 %v329
  %351 = vmatprep.subr.mxu0 0.0
  %352 = vmatpush1.msra.mxu0 %v330
  %353 = vmatprep.subr.mxu0 0.0
  %354 = vmatpush1.msra.mxu0 %v331
  %355 = vmatprep.subr.mxu0 0.0
  %356 = vmatpush1.msra.mxu0 %v332
  %357 = vmatprep.subr.mxu0 0.0
  %358 = vmatpush1.msra.mxu0 %v333
  %359 = vmatprep.subr.mxu0 0.0
  %360 = vmatpush1.msra.mxu0 %v334
  %361 = vmatprep.subr.mxu0 0.0
  %362 = vmatpush1.msra.mxu0 %v335
  %363 = vmatprep.subr.mxu0 0.0
  %364 = vmatpush1.msra.mxu0 %v336
  %365 = vmatprep.subr.mxu0 0.0
  %366 = vmatpush1.msra.mxu0 %v337
  %367 = vmatprep.subr.mxu0 0.0
  %368 = vmatpush1.msra.mxu0 %v338
  %369 = vmatprep.subr.mxu0 0.0
  %370 = vmatpush1.msra.mxu0 %v339
  %371 = vmatprep.subr.mxu0 0.0
  %372 = vmatpush1.msra.mxu0 %v340
  %373 = vmatprep.subr.mxu0 0.0
  %374 = vmatpush1.msra.mxu0 0.0
  %375 = vmatprep.subr.mxu0 0.0
  %376 = vmatpush1.msra.mxu0 0.0
  %377 = vmatprep.subr.mxu0 0.0
  %378 = vmatpush1.msra.mxu0 0.0
  %379 = vmatprep.subr.mxu0 0.0
  %380 = vmatpush1.msra.mxu0 0.0
  %381 = vmatprep.subr.mxu0 0.0
  %382 = vmatpush1.msra.mxu0 0.0
  %383 = vmatprep.subr.mxu0 0.0
  %384 = vmatpush1.msra.mxu0 0.0
  %385 = vmatprep.subr.mxu0 0.0
  %386 = vmatpush1.msra.mxu0 0.0
  %387 = vmatprep.subr.mxu0 0.0
  %388 = vmatpush1.msra.mxu0 0.0
  %389 = vmatprep.subr.mxu0 0.0
  %390 = vmatpush1.msra.mxu0 0.0
  %391 = vmatprep.subr.mxu0 0.0
  %392 = vmatpush1.msra.mxu0 0.0
  %393 = vmatprep.subr.mxu0 0.0
  %394 = vmatpush1.msra.mxu0 0.0
  %395 = vmatprep.subr.mxu0 0.0
  %396 = vmatpush1.msra.mxu0 0.0
  %397 = vmatprep.subr.mxu0 0.0
  %398 = vmatpush1.msra.mxu0 0.0
  %399 = vmatprep.subr.mxu0 0.0
  %400 = vmatpush1.msra.mxu0 0.0
  %401 = vmatprep.subr.mxu0 0.0
  %402 = vmatpush1.msra.mxu0 0.0
  %403 = vmatprep.subr.mxu0 0.0
  %404 = vmatpush1.msra.mxu0 0.0
  %405 = vmatprep.mubr.f32.mxu0 0.0
  %406 = vmatmul.mubr.f32.gmra.mrb[0].mxu0 %v322
  %v407 = vpop.f32.mrb[0].mxu0
  %v408 = vadd.f32 0.0, %v407
  %v409 = vpop.f32.mrb[0].mxu0
  %410 = vdwg.mxu0
  %v411 = vsub.f32 %v322, %v408
  %v412 = vmul.f32 %v411, %v411
  %413 = vmatprep.subr.mxu0 0.0
  %414 = vmatpush1.msra.mxu0 %v325
  %415 = vmatprep.subr.mxu0 0.0
  %416 = vmatpush1.msra.mxu0 %v326
  %417 = vmatprep.subr.mxu0 0.0
  %418 = vmatpush1.msra.mxu0 %v327
  %419 = vmatprep.subr.mxu0 0.0
  %420 = vmatpush1.msra.mxu0 %v328
  %421 = vmatprep.subr.mxu0 0.0
  %422 = vmatpush1.msra.mxu0 %v329
  %423 = vmatprep.subr.mxu0 0.0
  %424 = vmatpush1.msra.mxu0 %v330
  %425 = vmatprep.subr.mxu0 0.0
  %426 = vmatpush1.msra.mxu0 %v331
  %427 = vmatprep.subr.mxu0 0.0
  %428 = vmatpush1.msra.mxu0 %v332
  %429 = vmatprep.subr.mxu0 0.0
  %430 = vmatpush1.msra.mxu0 %v333
  %431 = vmatprep.subr.mxu0 0.0
  %432 = vmatpush1.msra.mxu0 %v334
  %433 = vmatprep.subr.mxu0 0.0
  %434 = vmatpush1.msra.mxu0 %v335
  %435 = vmatprep.subr.mxu0 0.0
  %436 = vmatpush1.msra.mxu0 %v336
  %437 = vmatprep.subr.mxu0 0.0
  %438 = vmatpush1.msra.mxu0 %v337
  %439 = vmatprep.subr.mxu0 0.0
  %440 = vmatpush1.msra.mxu0 %v338
  %441 = vmatprep.subr.mxu0 0.0
  %442 = vmatpush1.msra.mxu0 %v339
  %443 = vmatprep.subr.mxu0 0.0
  %444 = vmatpush1.msra.mxu0 %v340
  %445 = vmatprep.subr.mxu0 0.0
  %446 = vmatpush1.msra.mxu0 0.0
  %447 = vmatprep.subr.mxu0 0.0
  %448 = vmatpush1.msra.mxu0 0.0
  %449 = vmatprep.subr.mxu0 0.0
  %450 = vmatpush1.msra.mxu0 0.0
  %451 = vmatprep.subr.mxu0 0.0
  %452 = vmatpush1.msra.mxu0 0.0
  %453 = vmatprep.subr.mxu0 0.0
  %454 = vmatpush1.msra.mxu0 0.0
  %455 = vmatprep.subr.mxu0 0.0
  %456 = vmatpush1.msra.mxu0 0.0
  %457 = vmatprep.subr.mxu0 0.0
  %458 = vmatpush1.msra.mxu0 0.0
  %459 = vmatprep.subr.mxu0 0.0
  %460 = vmatpush1.msra.mxu0 0.0
  %461 = vmatprep.subr.mxu0 0.0
  %462 = vmatpush1.msra.mxu0 0.0
  %463 = vmatprep.subr.mxu0 0.0
  %464 = vmatpush1.msra.mxu0 0.0
  %465 = vmatprep.subr.mxu0 0.0
  %466 = vmatpush1.msra.mxu0 0.0
  %467 = vmatprep.subr.mxu0 0.0
  %468 = vmatpush1.msra.mxu0 0.0
  %469 = vmatprep.subr.mxu0 0.0
  %470 = vmatpush1.msra.mxu0 0.0
  %471 = vmatprep.subr.mxu0 0.0
  %472 = vmatpush1.msra.mxu0 0.0
  %473 = vmatprep.subr.mxu0 0.0
  %474 = vmatpush1.msra.mxu0 0.0
  %475 = vmatprep.subr.mxu0 0.0
  %476 = vmatpush1.msra.mxu0 0.0
  %477 = vmatprep.mubr.f32.mxu0 0.0
  %478 = vmatmul.mubr.f32.gmra.mrb[0].mxu0 %v412
  %v479 = vpop.f32.mrb[0].mxu0
  %v480 = vadd.f32 1e-05, %v479
  %v481 = vpop.f32.mrb[0].mxu0
  %482 = vdwg.mxu0
  %v483 = vrsqrt.pop %v480
  %v484 = vmul.f32 %v411, %v483
  %v485 = vld [vmem:[%s3] sm:$0x1]
  %v487 = vlaneseq
  %v488 = vshrl.u32 %v487, 7
  %v489 = vsub.s32 0, %v488
  %v490 = vrot.slane %v485, %v489
  %v492 = vmul.f32 %v484, %v490
  %v493 = vld [vmem:[%s4] sm:$0x1]
  %v495 = vlaneseq
  %v496 = vshrl.u32 %v495, 7
  %v497 = vsub.s32 0, %v496
  %v498 = vrot.slane %v493, %v497
  %v500 = vadd.f32 %v492, %v498
  %v501 = vmul.f32 %v500, 0.5
  %v502 = vmul.f32 %v500, 0.70710677
  %v503 = verf.f32.pop %v502
  %v504 = vadd.f32 %v503, 1.0
  %v505 = vmul.f32 %v501, %v504
  %506 = vst [vmem:[%s6] sm:$0xff] %v505
  // Predicated region
  $region26: #{a_call__.4} parent=0 // pred_check
    _
  $region27: #{a_call__.4} parent=0 // pred_check_branch
    %508 = sbr.rel (0) target = $region29
  $region28: #{a_call__.4} parent=0 // pred_region
    _
  $region29: #{a_call__.4} parent=0 // pred_fallthru
    _
  // Predicated region
  $region30: #{a_call__.4} parent=0 // pred_check
    _
  $region31: #{a_call__.4} parent=0 // pred_check_branch
    %510 = sbr.rel (0) target = $region33
  $region32: #{a_call__.4} parent=0 // pred_region
    _
  $region33: #{a_call__.4} parent=0 // pred_fallthru
    _

// kernel: a_call__.5
$region0: #{a_call__.5}
  #allocation0 [shape = 'u32[]', space=smem, size = 0x4, offset = 0x4, fixed_abs, tag = 'smem constant byte address 0x4 - core index']
  #allocation1 [shape = 'u32[144,128]{1,0:T(1,128)}', space=vmem, size = 0x12000, scoped, tag = 'internal scratch']
  %s0 = inlined_call_operand.vmem [shape: f32[8,256], index: 0, kind: input, shape index: {}]
  %s1 = inlined_call_operand.vmem [shape: f32[256,128], index: 1, kind: input, shape index: {}]
  %s2 = inlined_call_operand.vmem [shape: f32[1,128], index: 2, kind: input, shape index: {}]
  %s3 = inlined_call_operand.vmem [shape: f32[8,128], index: 3, kind: output, shape index: {}]
  %s4 = sld [smem:[#allocation0]]
  $region22: #{a_call__.5} parent=0
    _
  %s6 = ssub.s32 1, %s4
  %s7 = scalar_select 0, %s6, %s4
  // Predicated region
  $region2: #{a_call__.5} parent=0 // pred_check
    _
  $region3: #{a_call__.5} parent=0 // pred_check_branch
    %9 = sbr.rel (0) target = $region5
  $region4: #{a_call__.5} parent=0 // pred_region
    _
  $region5: #{a_call__.5} parent=0 // pred_fallthru
    _
  // Predicated region
  $region6: #{a_call__.5} parent=0 // pred_check
    _
  $region7: #{a_call__.5} parent=0 // pred_check_branch
    %11 = sbr.rel (0) target = $region9
  $region8: #{a_call__.5} parent=0 // pred_region
    _
  $region9: #{a_call__.5} parent=0 // pred_fallthru
    _
  // Predicated region
  $region10: #{a_call__.5} parent=0 // pred_check
    _
  $region11: #{a_call__.5} parent=0 // pred_check_branch
    %13 = sbr.rel (0) target = $region13
  $region12: #{a_call__.5} parent=0 // pred_region
    _
  $region13: #{a_call__.5} parent=0 // pred_fallthru
    _
  %v14 = vld [vmem:[%s0] sm:$0xff]
  %v15 = vld [vmem:[%s0 + $0x8] sm:$0xff]
  %v16 = vld [vmem:[%s1] sm:$0xff]
  %v17 = vld [vmem:[%s1 + $0x8] sm:$0xff]
  %v18 = vld [vmem:[%s1 + $0x10] sm:$0xff]
  %v19 = vld [vmem:[%s1 + $0x18] sm:$0xff]
  %v20 = vld [vmem:[%s1 + $0x20] sm:$0xff]
  %v21 = vld [vmem:[%s1 + $0x28] sm:$0xff]
  %v22 = vld [vmem:[%s1 + $0x30] sm:$0xff]
  %v23 = vld [vmem:[%s1 + $0x38] sm:$0xff]
  %v24 = vld [vmem:[%s1 + $0x40] sm:$0xff]
  %v25 = vld [vmem:[%s1 + $0x48] sm:$0xff]
  %v26 = vld [vmem:[%s1 + $0x50] sm:$0xff]
  %v27 = vld [vmem:[%s1 + $0x58] sm:$0xff]
  %v28 = vld [vmem:[%s1 + $0x60] sm:$0xff]
  %v29 = vld [vmem:[%s1 + $0x68] sm:$0xff]
  %v30 = vld [vmem:[%s1 + $0x70] sm:$0xff]
  %v31 = vld [vmem:[%s1 + $0x78] sm:$0xff]
  %v32 = vld [vmem:[%s1 + $0x80] sm:$0xff]
  %v33 = vld [vmem:[%s1 + $0x88] sm:$0xff]
  %v34 = vld [vmem:[%s1 + $0x90] sm:$0xff]
  %v35 = vld [vmem:[%s1 + $0x98] sm:$0xff]
  %v36 = vld [vmem:[%s1 + $0xa0] sm:$0xff]
  %v37 = vld [vmem:[%s1 + $0xa8] sm:$0xff]
  %v38 = vld [vmem:[%s1 + $0xb0] sm:$0xff]
  %v39 = vld [vmem:[%s1 + $0xb8] sm:$0xff]
  %v40 = vld [vmem:[%s1 + $0xc0] sm:$0xff]
  %v41 = vld [vmem:[%s1 + $0xc8] sm:$0xff]
  %v42 = vld [vmem:[%s1 + $0xd0] sm:$0xff]
  %v43 = vld [vmem:[%s1 + $0xd8] sm:$0xff]
  %v44 = vld [vmem:[%s1 + $0xe0] sm:$0xff]
  %v45 = vld [vmem:[%s1 + $0xe8] sm:$0xff]
  %v46 = vld [vmem:[%s1 + $0xf0] sm:$0xff]
  %v47 = vld [vmem:[%s1 + $0xf8] sm:$0xff]
  %v48 = vld [vmem:[%s2] sm:$0x1]
  %v50 = vlaneseq
  %v51 = vshrl.u32 %v50, 7
  %v52 = vsub.s32 0, %v51
  %v53 = vrot.slane %v48, %v52
  %55 = vmatprep.subr.mxu0 0.0
  %56 = vmatpush1.msra.mxu0 %v16
  %57 = vmatprep.subr.mxu0 0.0
  %58 = vmatpush1.msra.mxu0 %v17
  %59 = vmatprep.subr.mxu0 0.0
  %60 = vmatpush1.msra.mxu0 %v18
  %61 = vmatprep.subr.mxu0 0.0
  %62 = vmatpush1.msra.mxu0 %v19
  %63 = vmatprep.subr.mxu0 0.0
  %64 = vmatpush1.msra.mxu0 %v20
  %65 = vmatprep.subr.mxu0 0.0
  %66 = vmatpush1.msra.mxu0 %v21
  %67 = vmatprep.subr.mxu0 0.0
  %68 = vmatpush1.msra.mxu0 %v22
  %69 = vmatprep.subr.mxu0 0.0
  %70 = vmatpush1.msra.mxu0 %v23
  %71 = vmatprep.subr.mxu0 0.0
  %72 = vmatpush1.msra.mxu0 %v24
  %73 = vmatprep.subr.mxu0 0.0
  %74 = vmatpush1.msra.mxu0 %v25
  %75 = vmatprep.subr.mxu0 0.0
  %76 = vmatpush1.msra.mxu0 %v26
  %77 = vmatprep.subr.mxu0 0.0
  %78 = vmatpush1.msra.mxu0 %v27
  %79 = vmatprep.subr.mxu0 0.0
  %80 = vmatpush1.msra.mxu0 %v28
  %81 = vmatprep.subr.mxu0 0.0
  %82 = vmatpush1.msra.mxu0 %v29
  %83 = vmatprep.subr.mxu0 0.0
  %84 = vmatpush1.msra.mxu0 %v30
  %85 = vmatprep.subr.mxu0 0.0
  %86 = vmatpush1.msra.mxu0 %v31
  %87 = vmatprep.subr.mxu0 0.0
  %88 = vmatpush1.msra.mxu0 %v32
  %89 = vmatprep.subr.mxu0 0.0
  %90 = vmatpush1.msra.mxu0 %v33
  %91 = vmatprep.subr.mxu0 0.0
  %92 = vmatpush1.msra.mxu0 %v34
  %93 = vmatprep.subr.mxu0 0.0
  %94 = vmatpush1.msra.mxu0 %v35
  %95 = vmatprep.subr.mxu0 0.0
  %96 = vmatpush1.msra.mxu0 %v36
  %97 = vmatprep.subr.mxu0 0.0
  %98 = vmatpush1.msra.mxu0 %v37
  %99 = vmatprep.subr.mxu0 0.0
  %100 = vmatpush1.msra.mxu0 %v38
  %101 = vmatprep.subr.mxu0 0.0
  %102 = vmatpush1.msra.mxu0 %v39
  %103 = vmatprep.subr.mxu0 0.0
  %104 = vmatpush1.msra.mxu0 %v40
  %105 = vmatprep.subr.mxu0 0.0
  %106 = vmatpush1.msra.mxu0 %v41
  %107 = vmatprep.subr.mxu0 0.0
  %108 = vmatpush1.msra.mxu0 %v42
  %109 = vmatprep.subr.mxu0 0.0
  %110 = vmatpush1.msra.mxu0 %v43
  %111 = vmatprep.subr.mxu0 0.0
  %112 = vmatpush1.msra.mxu0 %v44
  %113 = vmatprep.subr.mxu0 0.0
  %114 = vmatpush1.msra.mxu0 %v45
  %115 = vmatprep.subr.mxu0 0.0
  %116 = vmatpush1.msra.mxu0 %v46
  %117 = vmatprep.subr.mxu0 0.0
  %118 = vmatpush1.msra.mxu0 %v47
  %119 = vmatprep.mubr.f32.mxu0 %v15
  %120 = vmatmul.mubr.f32.gmra.mrb[0].mxu0 %v14
  %v121 = vpop.f32.mrb[0].mxu0
  %v122 = vadd.f32 %v53, %v121
  %v123 = vpop.f32.mrb[0].mxu0
  %124 = vdwg.mxu0
  %125 = vst [vmem:[%s3] sm:$0xff] %v122
  // Predicated region
  $region14: #{a_call__.5} parent=0 // pred_check
    _
  $region15: #{a_call__.5} parent=0 // pred_check_branch
    %127 = sbr.rel (0) target = $region17
  $region16: #{a_call__.5} parent=0 // pred_region
    _
  $region17: #{a_call__.5} parent=0 // pred_fallthru
    _
  // Predicated region
  $region18: #{a_call__.5} parent=0 // pred_check
    _
  $region19: #{a_call__.5} parent=0 // pred_check_branch
    %129 = sbr.rel (0) target = $region21
  $region20: #{a_call__.5} parent=0 // pred_region
    _
  $region21: #{a_call__.5} parent=0 // pred_fallthru
    _

</llo_original>
